<compile_context>
chip_gen: v7x
topology: tpu7x:2x2x1
jax: 0.10.0
libtpu: 0.0.40
codegen_flags: <defaults>
</compile_context>

<pallas_src>
import jax
import jax.numpy as jnp
from jax import lax
from jax.experimental import pallas as pl
from jax.experimental.pallas import tpu as pltpu


# ---------------------------------------------------------------------------
# Kernel 1: lane-dense conv matmul   out(Cout, M) = relu(W(Cout,K) @ P(K,M) + b)
# ---------------------------------------------------------------------------
def _conv_mm_kernel(w_ref, p_ref, b_ref, o_ref):
    acc = jnp.dot(w_ref[...], p_ref[...], preferred_element_type=jnp.float32)
    acc = acc + b_ref[...]                      # (Cout, 1) broadcasts over lanes
    o_ref[...] = jnp.maximum(acc, 0.0).astype(o_ref.dtype)


def conv_matmul_bias_relu(w2, patches, b, *, tile_m=512):
    """w2: (Cout, K) bf16, patches: (K, M) bf16, b: (Cout,) f32 -> (Cout, M) f32."""
    cout, k = w2.shape
    k2, m = patches.shape
    assert k == k2
    tm = m if m <= tile_m else tile_m           # full-extent block when small
    grid = (pl.cdiv(m, tm),)
    return pl.pallas_call(
        _conv_mm_kernel,
        out_shape=jax.ShapeDtypeStruct((cout, m), jnp.float32),
        grid=grid,
        in_specs=[
            pl.BlockSpec((cout, k), lambda i: (0, 0)),   # weights: resident
            pl.BlockSpec((k, tm), lambda i: (0, i)),     # patches: M-tiled
            pl.BlockSpec((cout, 1), lambda i: (0, 0)),   # bias
        ],
        out_specs=pl.BlockSpec((cout, tm), lambda i: (0, i)),
        compiler_params=pltpu.CompilerParams(
            dimension_semantics=("parallel",)),
    )(w2, patches, b.reshape(cout, 1))


# ---------------------------------------------------------------------------
# Kernel 2: 2x2 max pool as a pure 3-op elementwise max of the four taps.
# (ReLU already applied inside the conv kernel.)
# ---------------------------------------------------------------------------
def _max4_kernel(a_ref, b_ref, c_ref, d_ref, o_ref):
    o_ref[...] = jnp.maximum(jnp.maximum(a_ref[...], b_ref[...]),
                             jnp.maximum(c_ref[...], d_ref[...]))


def maxpool2x2_cnhw(x, *, tile_l=512):
    """x: (C, N, H, W) f32 with even H, W -> (C, N, H//2, W//2) f32."""
    c, n, h, w = x.shape
    hp, wp = h // 2, w // 2
    L = n * hp * wp
    # TODO(synk): the four strided tap slices are still XLA glue; fusing the
    # pool into the conv epilogue (or a DMA gather in-kernel) would remove them.
    taps = [x[:, :, di::2, dj::2].reshape(c, L)
            for di in (0, 1) for dj in (0, 1)]
    tl = L if L <= tile_l else tile_l
    grid = (pl.cdiv(L, tl),)
    out = pl.pallas_call(
        _max4_kernel,
        out_shape=jax.ShapeDtypeStruct((c, L), x.dtype),
        grid=grid,
        in_specs=[pl.BlockSpec((c, tl), lambda i: (0, i))] * 4,
        out_specs=pl.BlockSpec((c, tl), lambda i: (0, i)),
        compiler_params=pltpu.CompilerParams(
            dimension_semantics=("parallel",)),
    )(*taps)
    return out.reshape(c, n, hp, wp)


# ---------------------------------------------------------------------------
# Kernel 3: fused fc1->relu->fc2->relu->fc3 (single pallas_call, 128-padded)
# ---------------------------------------------------------------------------
def _fc_fused_kernel(x_ref, w1_ref, b1_ref, w2_ref, b2_ref, w3_ref, b3_ref,
                     o_ref):
    h = jnp.dot(x_ref[...], w1_ref[...], preferred_element_type=jnp.float32)
    h = jnp.maximum(h + b1_ref[...], 0.0)
    h = jnp.dot(h.astype(w2_ref.dtype), w2_ref[...],
                preferred_element_type=jnp.float32)
    h = jnp.maximum(h + b2_ref[...], 0.0)
    h = jnp.dot(h.astype(w3_ref.dtype), w3_ref[...],
                preferred_element_type=jnp.float32)
    o_ref[...] = (h + b3_ref[...]).astype(o_ref.dtype)


def fc_stack(x, params, *, tile_n=256):
    """x: (N, 400) f32 -> logits (N, 10) f32; FC intermediates never leave VMEM."""
    n, kin = x.shape
    x16 = x.astype(jnp.bfloat16)
    w1 = params["fc1_w"].astype(jnp.bfloat16)     # (400, 128) zero-padded cols
    w2 = params["fc2_w"].astype(jnp.bfloat16)     # (128, 128)
    w3 = params["fc3_w"].astype(jnp.bfloat16)     # (128, 128)
    b1, b2, b3 = params["fc1_b"], params["fc2_b"], params["fc3_b"]  # (1,128) f32
    npad = w3.shape[1]
    tn = n if n <= tile_n else tile_n
    grid = (pl.cdiv(n, tn),)
    out = pl.pallas_call(
        _fc_fused_kernel,
        out_shape=jax.ShapeDtypeStruct((n, npad), jnp.float32),
        grid=grid,
        in_specs=[
            pl.BlockSpec((tn, kin), lambda i: (i, 0)),
            pl.BlockSpec(w1.shape, lambda i: (0, 0)),
            pl.BlockSpec(b1.shape, lambda i: (0, 0)),
            pl.BlockSpec(w2.shape, lambda i: (0, 0)),
            pl.BlockSpec(b2.shape, lambda i: (0, 0)),
            pl.BlockSpec(w3.shape, lambda i: (0, 0)),
            pl.BlockSpec(b3.shape, lambda i: (0, 0)),
        ],
        out_specs=pl.BlockSpec((tn, npad), lambda i: (i, 0)),
        compiler_params=pltpu.CompilerParams(
            dimension_semantics=("parallel",)),
    )(x16, w1, b1, w2, b2, w3, b3)
    return out[:, :10]


# ---------------------------------------------------------------------------
# Conv layer: lean im2col (no transposes) + lane-dense Pallas matmul.
# Activations live in channel-major (C, N, H, W) layout between layers.
# ---------------------------------------------------------------------------
def conv2d_relu(xc, w, b, *, tile_m=512):
    """Valid conv, stride 1, fused ReLU.

    xc: (Cin, N, H, W) f32; w: (Cout, Cin, K, K) f32 (PyTorch layout); b: (Cout,).
    Returns (Cout, N, OH, OW) f32.
    """
    cout, cin, k, _ = w.shape
    c, n, h, ww = xc.shape
    assert c == cin
    oh, ow = h - k + 1, ww - k + 1
    # TODO(synk): im2col is still host-side XLA glue (25x blow-up, but in bf16);
    # an in-kernel tap grid with element-offset index_maps would remove it.
    x16 = xc.astype(jnp.bfloat16)
    cols = [x16[:, :, kh:kh + oh, kw:kw + ow]             # (Cin, N, OH, OW)
            for kh in range(k) for kw in range(k)]
    patches = jnp.stack(cols, axis=1).reshape(cin * k * k, n * oh * ow)
    w2 = w.reshape(cout, cin * k * k).astype(jnp.bfloat16)
    y = conv_matmul_bias_relu(w2, patches, b, tile_m=tile_m)   # (Cout, N*OH*OW)
    return y.reshape(cout, n, oh, ow)


# ---------------------------------------------------------------------------
# Parameters (deterministic, PyTorch-default-style uniform init).
# FC weights/biases are zero-padded ONCE here so lanes are 128-dense.
# ---------------------------------------------------------------------------
def init_params(key):
    def uniform(k, shape, fan_in):
        bound = 1.0 / float(fan_in) ** 0.5
        return jax.random.uniform(k, shape, jnp.float32, -bound, bound)

    def pad2(a, r, c):
        return jnp.zeros((r, c), a.dtype).at[: a.shape[0], : a.shape[1]].set(a)

    def pad1(a, c):
        return jnp.zeros((1, c), a.dtype).at[0, : a.shape[0]].set(a)

    ks = jax.random.split(key, 10)
    fc1_w = uniform(ks[4], (16 * 5 * 5, 120), 16 * 5 * 5)
    fc1_b = uniform(ks[5], (120,), 16 * 5 * 5)
    fc2_w = uniform(ks[6], (120, 84), 120)
    fc2_b = uniform(ks[7], (84,), 120)
    fc3_w = uniform(ks[8], (84, 10), 84)
    fc3_b = uniform(ks[9], (10,), 84)
    return {
        "conv1_w": uniform(ks[0], (6, 3, 5, 5), 3 * 5 * 5),
        "conv1_b": uniform(ks[1], (6,), 3 * 5 * 5),
        "conv2_w": uniform(ks[2], (16, 6, 5, 5), 6 * 5 * 5),
        "conv2_b": uniform(ks[3], (16,), 6 * 5 * 5),
        # fc weights stored (in, out) and zero-padded to 128-lane multiples.
        "fc1_w": pad2(fc1_w, 400, 128), "fc1_b": pad1(fc1_b, 128),
        "fc2_w": pad2(fc2_w, 128, 128), "fc2_b": pad1(fc2_b, 128),
        "fc3_w": pad2(fc3_w, 128, 128), "fc3_b": pad1(fc3_b, 128),
    }


# ---------------------------------------------------------------------------
# Forward pass (mirrors Net.forward exactly)
# ---------------------------------------------------------------------------
def net_forward(params, x):
    xc = jnp.transpose(x, (1, 0, 2, 3))                        # NCHW -> (C,N,H,W)
    y = conv2d_relu(xc, params["conv1_w"], params["conv1_b"])  # (6, N, 28, 28)
    y = maxpool2x2_cnhw(y)                                     # (6, N, 14, 14)
    y = conv2d_relu(y, params["conv2_w"], params["conv2_b"])   # (16, N, 10, 10)
    y = maxpool2x2_cnhw(y)                                     # (16, N, 5, 5)
    feats = jnp.transpose(y, (1, 0, 2, 3)).reshape(-1, 16 * 5 * 5)  # torch .view order
    return fc_stack(feats, params)                             # (N, 10)


# Pure-JAX f32 reference for correctness (padded FC weights are math-neutral).
def net_forward_ref(params, x):
    dn = ("NCHW", "OIHW", "NCHW")
    y = lax.conv_general_dilated(x, params["conv1_w"], (1, 1), "VALID",
                                 dimension_numbers=dn)
    y = jnp.maximum(y + params["conv1_b"][None, :, None, None], 0.0)
    y = lax.reduce_window(y, -jnp.inf, lax.max, (1, 1, 2, 2), (1, 1, 2, 2), "VALID")
    y = lax.conv_general_dilated(y, params["conv2_w"], (1, 1), "VALID",
                                 dimension_numbers=dn)
    y = jnp.maximum(y + params["conv2_b"][None, :, None, None], 0.0)
    y = lax.reduce_window(y, -jnp.inf, lax.max, (1, 1, 2, 2), (1, 1, 2, 2), "VALID")
    f = y.reshape(y.shape[0], -1)
    h = jnp.maximum(f @ params["fc1_w"] + params["fc1_b"], 0.0)
    h = jnp.maximum(h @ params["fc2_w"] + params["fc2_b"], 0.0)
    return (h @ params["fc3_w"] + params["fc3_b"])[:, :10]


if __name__ == "__main__":
    key = jax.random.PRNGKey(0)
    pkey, xkey = jax.random.split(key)
    params = init_params(pkey)
    # fc1 expects 16*5*5 features -> input spatial size must be 32x32 (CIFAR).
    x = jax.random.normal(xkey, (2, 3, 32, 32), dtype=jnp.float32)

    out = jax.block_until_ready(jax.jit(net_forward)(params, x))
    assert out.shape == (2, 10) and out.dtype == jnp.float32

    # Kernel path uses bf16 matmul inputs (f32 accumulation) -> loose tolerance.
    ref = jax.block_until_ready(jax.jit(net_forward_ref)(params, x))
    max_err = float(jnp.max(jnp.abs(out - ref)))
    assert max_err < 1e-1, f"kernel/reference mismatch: max abs err {max_err}"

    print("KERNEL_OK")
</pallas_src>

<mosaic_0001>
module attributes {stable_mosaic.version = 11 : i64} {
  func.func @_conv_mm_kernel(%arg0: i32, %arg1: memref<6x75xbf16, #tpu.memory_space<vmem>>, %arg2: memref<75x512xbf16, #tpu.memory_space<vmem>>, %arg3: memref<6x1xf32, #tpu.memory_space<vmem>>, %arg4: memref<6x512xf32, #tpu.memory_space<vmem>>) attributes {dimension_semantics = [#tpu.dimension_semantics<parallel>], iteration_bounds = array<i64: 4>, scalar_prefetch = 0 : i64, scratch_operands = 0 : i64, tpu.core_type = #tpu.core_type<tc>, window_params = [{pipeline_mode = #tpu.pipeline_mode<synchronous>, transform_indices = @transform_0, window_bounds = array<i64: 6, 75>}, {transform_indices = @transform_1, window_bounds = array<i64: 75, 512>}, {pipeline_mode = #tpu.pipeline_mode<synchronous>, transform_indices = @transform_2, window_bounds = array<i64: 6, 1>}, {transform_indices = @transform_3, window_bounds = array<i64: 6, 512>}]} {
    %c0 = arith.constant 0 : index
    %c0_0 = arith.constant 0 : index
    %0 = vector.load %arg1[%c0, %c0_0] : memref<6x75xbf16, #tpu.memory_space<vmem>>, vector<6x75xbf16>
    %c0_1 = arith.constant 0 : index
    %c0_2 = arith.constant 0 : index
    %1 = vector.load %arg2[%c0_1, %c0_2] : memref<75x512xbf16, #tpu.memory_space<vmem>>, vector<75x512xbf16>
    %cst = arith.constant dense<0.000000e+00> : vector<6x512xf32>
    %2 = tpu.matmul %0, %1, %cst {dimension_numbers = #tpu.dot_dimension_numbers<[1], [0], [0], [1], [0, 0, 1, 1], [], []>} : vector<6x75xbf16>, vector<75x512xbf16>, vector<6x512xf32> -> vector<6x512xf32>
    %c0_3 = arith.constant 0 : index
    %c0_4 = arith.constant 0 : index
    %3 = vector.load %arg3[%c0_3, %c0_4] : memref<6x1xf32, #tpu.memory_space<vmem>>, vector<6x1xf32>
    %4 = vector.broadcast %3 : vector<6x1xf32> to vector<6x512xf32>
    %5 = arith.addf %2, %4 : vector<6x512xf32>
    %cst_5 = arith.constant 0.000000e+00 : f32
    %6 = vector.broadcast %cst_5 : f32 to vector<6x512xf32>
    %7 = arith.maximumf %5, %6 : vector<6x512xf32>
    %c0_6 = arith.constant 0 : index
    %c0_7 = arith.constant 0 : index
    %8 = vector.load %arg4[%c0_6, %c0_7] : memref<6x512xf32, #tpu.memory_space<vmem>>, vector<6x512xf32>
    tpu.vector_store %arg4[%c0_6, %c0_7], %7 {strides = array<i32>} : memref<6x512xf32, #tpu.memory_space<vmem>>, vector<6x512xf32>,
    return
  }
  func.func @transform_0(%arg0: i32) -> (i32, i32) {
    %c0_i32 = arith.constant 0 : i32
    %c0_i32_0 = arith.constant 0 : i32
    %c0_i32_1 = arith.constant 0 : i32
    return %c0_i32, %c0_i32_0 : i32, i32
  }
  func.func @transform_1(%arg0: i32) -> (i32, i32) {
    %c0_i32 = arith.constant 0 : i32
    %c0_i32_0 = arith.constant 0 : i32
    return %c0_i32, %arg0 : i32, i32
  }
  func.func @transform_2(%arg0: i32) -> (i32, i32) {
    %c0_i32 = arith.constant 0 : i32
    %c0_i32_0 = arith.constant 0 : i32
    %c0_i32_1 = arith.constant 0 : i32
    return %c0_i32, %c0_i32_0 : i32, i32
  }
  func.func @transform_3(%arg0: i32) -> (i32, i32) {
    %c0_i32 = arith.constant 0 : i32
    %c0_i32_0 = arith.constant 0 : i32
    return %c0_i32, %arg0 : i32, i32
  }
}

module attributes {stable_mosaic.version = 11 : i64} {
  func.func @_max4_kernel(%arg0: i32, %arg1: memref<6x392xf32, #tpu.memory_space<vmem>>, %arg2: memref<6x392xf32, #tpu.memory_space<vmem>>, %arg3: memref<6x392xf32, #tpu.memory_space<vmem>>, %arg4: memref<6x392xf32, #tpu.memory_space<vmem>>, %arg5: memref<6x392xf32, #tpu.memory_space<vmem>>) attributes {dimension_semantics = [#tpu.dimension_semantics<parallel>], iteration_bounds = array<i64: 1>, scalar_prefetch = 0 : i64, scratch_operands = 0 : i64, tpu.core_type = #tpu.core_type<tc>, window_params = [{transform_indices = @transform_0, window_bounds = array<i64: 6, 392>}, {transform_indices = @transform_1, window_bounds = array<i64: 6, 392>}, {transform_indices = @transform_2, window_bounds = array<i64: 6, 392>}, {transform_indices = @transform_3, window_bounds = array<i64: 6, 392>}, {transform_indices = @transform_4, window_bounds = array<i64: 6, 392>}]} {
    %c0 = arith.constant 0 : index
    %c0_0 = arith.constant 0 : index
    %0 = vector.load %arg1[%c0, %c0_0] : memref<6x392xf32, #tpu.memory_space<vmem>>, vector<6x392xf32>
    %c0_1 = arith.constant 0 : index
    %c0_2 = arith.constant 0 : index
    %1 = vector.load %arg2[%c0_1, %c0_2] : memref<6x392xf32, #tpu.memory_space<vmem>>, vector<6x392xf32>
    %2 = arith.maximumf %0, %1 : vector<6x392xf32>
    %c0_3 = arith.constant 0 : index
    %c0_4 = arith.constant 0 : index
    %3 = vector.load %arg3[%c0_3, %c0_4] : memref<6x392xf32, #tpu.memory_space<vmem>>, vector<6x392xf32>
    %c0_5 = arith.constant 0 : index
    %c0_6 = arith.constant 0 : index
    %4 = vector.load %arg4[%c0_5, %c0_6] : memref<6x392xf32, #tpu.memory_space<vmem>>, vector<6x392xf32>
    %5 = arith.maximumf %3, %4 : vector<6x392xf32>
    %6 = arith.maximumf %2, %5 : vector<6x392xf32>
    %c0_7 = arith.constant 0 : index
    %c0_8 = arith.constant 0 : index
    %7 = vector.load %arg5[%c0_7, %c0_8] : memref<6x392xf32, #tpu.memory_space<vmem>>, vector<6x392xf32>
    tpu.vector_store %arg5[%c0_7, %c0_8], %6 {strides = array<i32>} : memref<6x392xf32, #tpu.memory_space<vmem>>, vector<6x392xf32>,
    return
  }
  func.func @transform_0(%arg0: i32) -> (i32, i32) {
    %c0_i32 = arith.constant 0 : i32
    %c0_i32_0 = arith.constant 0 : i32
    return %c0_i32, %arg0 : i32, i32
  }
  func.func @transform_1(%arg0: i32) -> (i32, i32) {
    %c0_i32 = arith.constant 0 : i32
    %c0_i32_0 = arith.constant 0 : i32
    return %c0_i32, %arg0 : i32, i32
  }
  func.func @transform_2(%arg0: i32) -> (i32, i32) {
    %c0_i32 = arith.constant 0 : i32
    %c0_i32_0 = arith.constant 0 : i32
    return %c0_i32, %arg0 : i32, i32
  }
  func.func @transform_3(%arg0: i32) -> (i32, i32) {
    %c0_i32 = arith.constant 0 : i32
    %c0_i32_0 = arith.constant 0 : i32
    return %c0_i32, %arg0 : i32, i32
  }
  func.func @transform_4(%arg0: i32) -> (i32, i32) {
    %c0_i32 = arith.constant 0 : i32
    %c0_i32_0 = arith.constant 0 : i32
    return %c0_i32, %arg0 : i32, i32
  }
}

module attributes {stable_mosaic.version = 11 : i64} {
  func.func @_conv_mm_kernel(%arg0: i32, %arg1: memref<16x150xbf16, #tpu.memory_space<vmem>>, %arg2: memref<150x200xbf16, #tpu.memory_space<vmem>>, %arg3: memref<16x1xf32, #tpu.memory_space<vmem>>, %arg4: memref<16x200xf32, #tpu.memory_space<vmem>>) attributes {dimension_semantics = [#tpu.dimension_semantics<parallel>], iteration_bounds = array<i64: 1>, scalar_prefetch = 0 : i64, scratch_operands = 0 : i64, tpu.core_type = #tpu.core_type<tc>, window_params = [{pipeline_mode = #tpu.pipeline_mode<synchronous>, transform_indices = @transform_0, window_bounds = array<i64: 16, 150>}, {transform_indices = @transform_1, window_bounds = array<i64: 150, 200>}, {pipeline_mode = #tpu.pipeline_mode<synchronous>, transform_indices = @transform_2, window_bounds = array<i64: 16, 1>}, {transform_indices = @transform_3, window_bounds = array<i64: 16, 200>}]} {
    %c0 = arith.constant 0 : index
    %c0_0 = arith.constant 0 : index
    %0 = vector.load %arg1[%c0, %c0_0] : memref<16x150xbf16, #tpu.memory_space<vmem>>, vector<16x150xbf16>
    %c0_1 = arith.constant 0 : index
    %c0_2 = arith.constant 0 : index
    %1 = vector.load %arg2[%c0_1, %c0_2] : memref<150x200xbf16, #tpu.memory_space<vmem>>, vector<150x200xbf16>
    %cst = arith.constant dense<0.000000e+00> : vector<16x200xf32>
    %2 = tpu.matmul %0, %1, %cst {dimension_numbers = #tpu.dot_dimension_numbers<[1], [0], [0], [1], [0, 0, 1, 1], [], []>} : vector<16x150xbf16>, vector<150x200xbf16>, vector<16x200xf32> -> vector<16x200xf32>
    %c0_3 = arith.constant 0 : index
    %c0_4 = arith.constant 0 : index
    %3 = vector.load %arg3[%c0_3, %c0_4] : memref<16x1xf32, #tpu.memory_space<vmem>>, vector<16x1xf32>
    %4 = vector.broadcast %3 : vector<16x1xf32> to vector<16x200xf32>
    %5 = arith.addf %2, %4 : vector<16x200xf32>
    %cst_5 = arith.constant 0.000000e+00 : f32
    %6 = vector.broadcast %cst_5 : f32 to vector<16x200xf32>
    %7 = arith.maximumf %5, %6 : vector<16x200xf32>
    %c0_6 = arith.constant 0 : index
    %c0_7 = arith.constant 0 : index
    %8 = vector.load %arg4[%c0_6, %c0_7] : memref<16x200xf32, #tpu.memory_space<vmem>>, vector<16x200xf32>
    tpu.vector_store %arg4[%c0_6, %c0_7], %7 {strides = array<i32>} : memref<16x200xf32, #tpu.memory_space<vmem>>, vector<16x200xf32>,
    return
  }
  func.func @transform_0(%arg0: i32) -> (i32, i32) {
    %c0_i32 = arith.constant 0 : i32
    %c0_i32_0 = arith.constant 0 : i32
    %c0_i32_1 = arith.constant 0 : i32
    return %c0_i32, %c0_i32_0 : i32, i32
  }
  func.func @transform_1(%arg0: i32) -> (i32, i32) {
    %c0_i32 = arith.constant 0 : i32
    %c0_i32_0 = arith.constant 0 : i32
    return %c0_i32, %arg0 : i32, i32
  }
  func.func @transform_2(%arg0: i32) -> (i32, i32) {
    %c0_i32 = arith.constant 0 : i32
    %c0_i32_0 = arith.constant 0 : i32
    %c0_i32_1 = arith.constant 0 : i32
    return %c0_i32, %c0_i32_0 : i32, i32
  }
  func.func @transform_3(%arg0: i32) -> (i32, i32) {
    %c0_i32 = arith.constant 0 : i32
    %c0_i32_0 = arith.constant 0 : i32
    return %c0_i32, %arg0 : i32, i32
  }
}

module attributes {stable_mosaic.version = 11 : i64} {
  func.func @_max4_kernel(%arg0: i32, %arg1: memref<16x50xf32, #tpu.memory_space<vmem>>, %arg2: memref<16x50xf32, #tpu.memory_space<vmem>>, %arg3: memref<16x50xf32, #tpu.memory_space<vmem>>, %arg4: memref<16x50xf32, #tpu.memory_space<vmem>>, %arg5: memref<16x50xf32, #tpu.memory_space<vmem>>) attributes {dimension_semantics = [#tpu.dimension_semantics<parallel>], iteration_bounds = array<i64: 1>, scalar_prefetch = 0 : i64, scratch_operands = 0 : i64, tpu.core_type = #tpu.core_type<tc>, window_params = [{transform_indices = @transform_0, window_bounds = array<i64: 16, 50>}, {transform_indices = @transform_1, window_bounds = array<i64: 16, 50>}, {transform_indices = @transform_2, window_bounds = array<i64: 16, 50>}, {transform_indices = @transform_3, window_bounds = array<i64: 16, 50>}, {transform_indices = @transform_4, window_bounds = array<i64: 16, 50>}]} {
    %c0 = arith.constant 0 : index
    %c0_0 = arith.constant 0 : index
    %0 = vector.load %arg1[%c0, %c0_0] : memref<16x50xf32, #tpu.memory_space<vmem>>, vector<16x50xf32>
    %c0_1 = arith.constant 0 : index
    %c0_2 = arith.constant 0 : index
    %1 = vector.load %arg2[%c0_1, %c0_2] : memref<16x50xf32, #tpu.memory_space<vmem>>, vector<16x50xf32>
    %2 = arith.maximumf %0, %1 : vector<16x50xf32>
    %c0_3 = arith.constant 0 : index
    %c0_4 = arith.constant 0 : index
    %3 = vector.load %arg3[%c0_3, %c0_4] : memref<16x50xf32, #tpu.memory_space<vmem>>, vector<16x50xf32>
    %c0_5 = arith.constant 0 : index
    %c0_6 = arith.constant 0 : index
    %4 = vector.load %arg4[%c0_5, %c0_6] : memref<16x50xf32, #tpu.memory_space<vmem>>, vector<16x50xf32>
    %5 = arith.maximumf %3, %4 : vector<16x50xf32>
    %6 = arith.maximumf %2, %5 : vector<16x50xf32>
    %c0_7 = arith.constant 0 : index
    %c0_8 = arith.constant 0 : index
    %7 = vector.load %arg5[%c0_7, %c0_8] : memref<16x50xf32, #tpu.memory_space<vmem>>, vector<16x50xf32>
    tpu.vector_store %arg5[%c0_7, %c0_8], %6 {strides = array<i32>} : memref<16x50xf32, #tpu.memory_space<vmem>>, vector<16x50xf32>,
    return
  }
  func.func @transform_0(%arg0: i32) -> (i32, i32) {
    %c0_i32 = arith.constant 0 : i32
    %c0_i32_0 = arith.constant 0 : i32
    return %c0_i32, %arg0 : i32, i32
  }
  func.func @transform_1(%arg0: i32) -> (i32, i32) {
    %c0_i32 = arith.constant 0 : i32
    %c0_i32_0 = arith.constant 0 : i32
    return %c0_i32, %arg0 : i32, i32
  }
  func.func @transform_2(%arg0: i32) -> (i32, i32) {
    %c0_i32 = arith.constant 0 : i32
    %c0_i32_0 = arith.constant 0 : i32
    return %c0_i32, %arg0 : i32, i32
  }
  func.func @transform_3(%arg0: i32) -> (i32, i32) {
    %c0_i32 = arith.constant 0 : i32
    %c0_i32_0 = arith.constant 0 : i32
    return %c0_i32, %arg0 : i32, i32
  }
  func.func @transform_4(%arg0: i32) -> (i32, i32) {
    %c0_i32 = arith.constant 0 : i32
    %c0_i32_0 = arith.constant 0 : i32
    return %c0_i32, %arg0 : i32, i32
  }
}

module attributes {stable_mosaic.version = 11 : i64} {
  func.func @_fc_fused_kernel(%arg0: i32, %arg1: memref<2x400xbf16, #tpu.memory_space<vmem>>, %arg2: memref<400x128xbf16, #tpu.memory_space<vmem>>, %arg3: memref<1x128xf32, #tpu.memory_space<vmem>>, %arg4: memref<128x128xbf16, #tpu.memory_space<vmem>>, %arg5: memref<1x128xf32, #tpu.memory_space<vmem>>, %arg6: memref<128x128xbf16, #tpu.memory_space<vmem>>, %arg7: memref<1x128xf32, #tpu.memory_space<vmem>>, %arg8: memref<2x128xf32, #tpu.memory_space<vmem>>) attributes {dimension_semantics = [#tpu.dimension_semantics<parallel>], iteration_bounds = array<i64: 1>, scalar_prefetch = 0 : i64, scratch_operands = 0 : i64, tpu.core_type = #tpu.core_type<tc>, window_params = [{transform_indices = @transform_0, window_bounds = array<i64: 2, 400>}, {pipeline_mode = #tpu.pipeline_mode<synchronous>, transform_indices = @transform_1, window_bounds = array<i64: 400, 128>}, {pipeline_mode = #tpu.pipeline_mode<synchronous>, transform_indices = @transform_2, window_bounds = array<i64: 1, 128>}, {pipeline_mode = #tpu.pipeline_mode<synchronous>, transform_indices = @transform_3, window_bounds = array<i64: 128, 128>}, {pipeline_mode = #tpu.pipeline_mode<synchronous>, transform_indices = @transform_4, window_bounds = array<i64: 1, 128>}, {pipeline_mode = #tpu.pipeline_mode<synchronous>, transform_indices = @transform_5, window_bounds = array<i64: 128, 128>}, {pipeline_mode = #tpu.pipeline_mode<synchronous>, transform_indices = @transform_6, window_bounds = array<i64: 1, 128>}, {transform_indices = @transform_7, window_bounds = array<i64: 2, 128>}]} {
    %c0 = arith.constant 0 : index
    %c0_0 = arith.constant 0 : index
    %0 = vector.load %arg1[%c0, %c0_0] : memref<2x400xbf16, #tpu.memory_space<vmem>>, vector<2x400xbf16>
    %c0_1 = arith.constant 0 : index
    %c0_2 = arith.constant 0 : index
    %1 = vector.load %arg2[%c0_1, %c0_2] : memref<400x128xbf16, #tpu.memory_space<vmem>>, vector<400x128xbf16>
    %cst = arith.constant dense<0.000000e+00> : vector<2x128xf32>
    %2 = tpu.matmul %0, %1, %cst {dimension_numbers = #tpu.dot_dimension_numbers<[1], [0], [0], [1], [0, 0, 1, 1], [], []>} : vector<2x400xbf16>, vector<400x128xbf16>, vector<2x128xf32> -> vector<2x128xf32>
    %c0_3 = arith.constant 0 : index
    %c0_4 = arith.constant 0 : index
    %3 = vector.load %arg3[%c0_3, %c0_4] : memref<1x128xf32, #tpu.memory_space<vmem>>, vector<1x128xf32>
    %4 = vector.broadcast %3 : vector<1x128xf32> to vector<2x128xf32>
    %5 = arith.addf %2, %4 : vector<2x128xf32>
    %cst_5 = arith.constant 0.000000e+00 : f32
    %6 = vector.broadcast %cst_5 : f32 to vector<2x128xf32>
    %7 = arith.maximumf %5, %6 : vector<2x128xf32>
    %8 = arith.truncf %7 : vector<2x128xf32> to vector<2x128xbf16>
    %c0_6 = arith.constant 0 : index
    %c0_7 = arith.constant 0 : index
    %9 = vector.load %arg4[%c0_6, %c0_7] : memref<128x128xbf16, #tpu.memory_space<vmem>>, vector<128x128xbf16>
    %cst_8 = arith.constant dense<0.000000e+00> : vector<2x128xf32>
    %10 = tpu.matmul %8, %9, %cst_8 {dimension_numbers = #tpu.dot_dimension_numbers<[1], [0], [0], [1], [0, 0, 1, 1], [], []>} : vector<2x128xbf16>, vector<128x128xbf16>, vector<2x128xf32> -> vector<2x128xf32>
    %c0_9 = arith.constant 0 : index
    %c0_10 = arith.constant 0 : index
    %11 = vector.load %arg5[%c0_9, %c0_10] : memref<1x128xf32, #tpu.memory_space<vmem>>, vector<1x128xf32>
    %12 = vector.broadcast %11 : vector<1x128xf32> to vector<2x128xf32>
    %13 = arith.addf %10, %12 : vector<2x128xf32>
    %cst_11 = arith.constant 0.000000e+00 : f32
    %14 = vector.broadcast %cst_11 : f32 to vector<2x128xf32>
    %15 = arith.maximumf %13, %14 : vector<2x128xf32>
    %16 = arith.truncf %15 : vector<2x128xf32> to vector<2x128xbf16>
    %c0_12 = arith.constant 0 : index
    %c0_13 = arith.constant 0 : index
    %17 = vector.load %arg6[%c0_12, %c0_13] : memref<128x128xbf16, #tpu.memory_space<vmem>>, vector<128x128xbf16>
    %cst_14 = arith.constant dense<0.000000e+00> : vector<2x128xf32>
    %18 = tpu.matmul %16, %17, %cst_14 {dimension_numbers = #tpu.dot_dimension_numbers<[1], [0], [0], [1], [0, 0, 1, 1], [], []>} : vector<2x128xbf16>, vector<128x128xbf16>, vector<2x128xf32> -> vector<2x128xf32>
    %c0_15 = arith.constant 0 : index
    %c0_16 = arith.constant 0 : index
    %19 = vector.load %arg7[%c0_15, %c0_16] : memref<1x128xf32, #tpu.memory_space<vmem>>, vector<1x128xf32>
    %20 = vector.broadcast %19 : vector<1x128xf32> to vector<2x128xf32>
    %21 = arith.addf %18, %20 : vector<2x128xf32>
    %c0_17 = arith.constant 0 : index
    %c0_18 = arith.constant 0 : index
    %22 = vector.load %arg8[%c0_17, %c0_18] : memref<2x128xf32, #tpu.memory_space<vmem>>, vector<2x128xf32>
    tpu.vector_store %arg8[%c0_17, %c0_18], %21 {strides = array<i32>} : memref<2x128xf32, #tpu.memory_space<vmem>>, vector<2x128xf32>,
    return
  }
  func.func @transform_0(%arg0: i32) -> (i32, i32) {
    %c0_i32 = arith.constant 0 : i32
    %c0_i32_0 = arith.constant 0 : i32
    return %arg0, %c0_i32 : i32, i32
  }
  func.func @transform_1(%arg0: i32) -> (i32, i32) {
    %c0_i32 = arith.constant 0 : i32
    %c0_i32_0 = arith.constant 0 : i32
    %c0_i32_1 = arith.constant 0 : i32
    return %c0_i32, %c0_i32_0 : i32, i32
  }
  func.func @transform_2(%arg0: i32) -> (i32, i32) {
    %c0_i32 = arith.constant 0 : i32
    %c0_i32_0 = arith.constant 0 : i32
    %c0_i32_1 = arith.constant 0 : i32
    return %c0_i32, %c0_i32_0 : i32, i32
  }
  func.func @transform_3(%arg0: i32) -> (i32, i32) {
    %c0_i32 = arith.constant 0 : i32
    %c0_i32_0 = arith.constant 0 : i32
    %c0_i32_1 = arith.constant 0 : i32
    return %c0_i32, %c0_i32_0 : i32, i32
  }
  func.func @transform_4(%arg0: i32) -> (i32, i32) {
    %c0_i32 = arith.constant 0 : i32
    %c0_i32_0 = arith.constant 0 : i32
    %c0_i32_1 = arith.constant 0 : i32
    return %c0_i32, %c0_i32_0 : i32, i32
  }
  func.func @transform_5(%arg0: i32) -> (i32, i32) {
    %c0_i32 = arith.constant 0 : i32
    %c0_i32_0 = arith.constant 0 : i32
    %c0_i32_1 = arith.constant 0 : i32
    return %c0_i32, %c0_i32_0 : i32, i32
  }
  func.func @transform_6(%arg0: i32) -> (i32, i32) {
    %c0_i32 = arith.constant 0 : i32
    %c0_i32_0 = arith.constant 0 : i32
    %c0_i32_1 = arith.constant 0 : i32
    return %c0_i32, %c0_i32_0 : i32, i32
  }
  func.func @transform_7(%arg0: i32) -> (i32, i32) {
    %c0_i32 = arith.constant 0 : i32
    %c0_i32_0 = arith.constant 0 : i32
    return %arg0, %c0_i32 : i32, i32
  }
}

</mosaic_0001>

<llo_original>
// kernel: net_forward.5
$region0: #{net_forward.5}
  #allocation0 [shape = 'u32[]', space=smem, size = 0x4, offset = 0x4, fixed_abs, tag = 'smem constant byte address 0x4 - core index']
  #allocation1 [shape = 'u32[144,128]{1,0:T(1,128)}', space=vmem, size = 0x12000, scoped, tag = 'internal scratch']
  %s0 = inlined_call_operand.vmem [shape: bf16[6,75], index: 0, kind: input, shape index: {}]
  %s1 = inlined_call_operand.vmem [shape: bf16[75,1568], index: 1, kind: input, shape index: {}]
  %s2 = inlined_call_operand.vmem [shape: f32[6,1], index: 2, kind: input, shape index: {}]
  %s3 = inlined_call_operand.vmem [shape: f32[6,1568], index: 3, kind: output, shape index: {}]
  %s4 = sld [smem:[#allocation0]]
  $region173: #{net_forward.5} parent=0
    _
  %s6 = ssub.s32 1, %s4
  %s7 = scalar_select 0, %s6, %s4
  $region1: #{net_forward.5} parent=0
    #allocation2 [shape = 'u8[163840]{0}', space=vmem, size = 0x28000, scoped, tag = 'input window, operand 1']
    #allocation3 [shape = 'u8[32768]{0}', space=vmem, size = 0x8000, scoped, tag = 'output window, operand 0']
    loop: start=0, step=1, limit=6
    $region2: #{net_forward.5} parent=1 // loop_pre_header
      _
    $region3: #{net_forward.5} parent=1 // loop_header
      %s9 = sphi 0, %s13
      %p10 = scmp.ge.s32.totalorder %s9, 6
      %s17 = sphi 0, %s17
      %s19 = sphi 0, %s17
      %s20 = sphi 0, %s19
      %s34 = sphi 0, %s20
      %s40 = sphi 0, %s42
      %s43 = sphi 0, %s40
      %s44 = sphi 0, %s43
      %s60 = sphi 0, %s44
      %s64 = sphi 0, %s64
      %s66 = sphi 0, %s64
      %s67 = sphi 0, %s66
      %s81 = sphi 0, %s67
      %s87 = sphi 0, %s89
      %s90 = sphi 0, %s87
      %s91 = sphi 0, %s90
      %s107 = sphi 0, %s91
    $region4: #{net_forward.5} parent=1 // loop_header_branch
      %12 = sbr.rel (%p10) target = $region8
    $region5: #{net_forward.5} parent=1 // loop_body
      %s14 = ssub.s32 %s9, 1
      %s15 = ssub.s32 %s9, 2
      %s16 = sadd.s32 %s9, 1
      %s18 = sadd.s32 %s17, 1
      %p21 = scmp.eq.s32.totalorder %s9, 3
      %p22 = scmp.ne.s32.totalorder %s17, %s19
      %p23 = scmp.eq.s32.totalorder %s9, 0
      %p24 = por %p22, %p23
      %p25 = scmp.ne.s32.totalorder %s17, %s19
      %p26 = scmp.eq.s32.totalorder %s14, 3
      %p27 = por %p25, %p26
      %p28 = scmp.ne.s32.totalorder %s19, %s20
      %p29 = scmp.eq.s32.totalorder %s14, 0
      %p30 = por %p28, %p29
      %p31 = scmp.ne.s32.totalorder %s19, %s20
      %p32 = scmp.eq.s32.totalorder %s15, 3
      %p33 = por %p31, %p32
      %p35 = scmp.ne.s32.totalorder %s20, %s34
      %p36 = scmp.eq.s32.totalorder %s15, 0
      %p37 = por %p35, %p36
      %s38 = ssub.s32 %s9, %s16
      %p39 = scmp.eq.s32.totalorder %s38, 0
      %s41 = sadd.s32 %s40, 1
      %s42 = scalar_select %p39, %s40, %s41
      %p45 = pneg %p39
      %p46 = scmp.eq.s32.totalorder %s9, 3
      %p47 = por %p45, %p46
      %p48 = scmp.ne.s32.totalorder %s40, %s43
      %p49 = scmp.eq.s32.totalorder %s9, 0
      %p50 = por %p48, %p49
      %p51 = scmp.ne.s32.totalorder %s40, %s43
      %p52 = scmp.eq.s32.totalorder %s14, 3
      %p53 = por %p51, %p52
      %p54 = scmp.ne.s32.totalorder %s43, %s44
      %p55 = scmp.eq.s32.totalorder %s14, 0
      %p56 = por %p54, %p55
      %p57 = scmp.ne.s32.totalorder %s43, %s44
      %p58 = scmp.eq.s32.totalorder %s15, 3
      %p59 = por %p57, %p58
      %p61 = scmp.ne.s32.totalorder %s44, %s60
      %p62 = scmp.eq.s32.totalorder %s15, 0
      %p63 = por %p61, %p62
      %s65 = sadd.s32 %s64, 1
      %p68 = scmp.eq.s32.totalorder %s9, 3
      %p69 = scmp.ne.s32.totalorder %s64, %s66
      %p70 = scmp.eq.s32.totalorder %s9, 0
      %p71 = por %p69, %p70
      %p72 = scmp.ne.s32.totalorder %s64, %s66
      %p73 = scmp.eq.s32.totalorder %s14, 3
      %p74 = por %p72, %p73
      %p75 = scmp.ne.s32.totalorder %s66, %s67
      %p76 = scmp.eq.s32.totalorder %s14, 0
      %p77 = por %p75, %p76
      %p78 = scmp.ne.s32.totalorder %s66, %s67
      %p79 = scmp.eq.s32.totalorder %s15, 3
      %p80 = por %p78, %p79
      %p82 = scmp.ne.s32.totalorder %s67, %s81
      %p83 = scmp.eq.s32.totalorder %s15, 0
      %p84 = por %p82, %p83
      %s85 = ssub.s32 %s9, %s16
      %p86 = scmp.eq.s32.totalorder %s85, 0
      %s88 = sadd.s32 %s87, 1
      %s89 = scalar_select %p86, %s87, %s88
      %p92 = pneg %p86
      %p93 = scmp.eq.s32.totalorder %s9, 3
      %p94 = por %p92, %p93
      %p95 = scmp.ne.s32.totalorder %s87, %s90
      %p96 = scmp.eq.s32.totalorder %s9, 0
      %p97 = por %p95, %p96
      %p98 = scmp.ne.s32.totalorder %s87, %s90
      %p99 = scmp.eq.s32.totalorder %s14, 3
      %p100 = por %p98, %p99
      %p101 = scmp.ne.s32.totalorder %s90, %s91
      %p102 = scmp.eq.s32.totalorder %s14, 0
      %p103 = por %p101, %p102
      %p104 = scmp.ne.s32.totalorder %s90, %s91
      %p105 = scmp.eq.s32.totalorder %s15, 3
      %p106 = por %p104, %p105
      %p108 = scmp.ne.s32.totalorder %s91, %s107
      %p109 = scmp.eq.s32.totalorder %s15, 0
      %p110 = por %p108, %p109
      %p111 = scmp.le.s32.totalorder 1, %s9
      %p112 = scmp.lt.s32.totalorder %s9, 5
      %p113 = pnand %p111, %p112
      %p114 = pneg %p113
      // Predicated region
      $region9: #{net_forward.5} parent=5 // pred_check
        _
      $region10: #{net_forward.5} parent=5 // pred_check_branch
        %116 = sbr.rel (%p113) target = $region12
      $region11: #{net_forward.5} parent=5 // pred_region
        %s117 = ssub.s32 %s9, 1
        // Predicated region
        $region13: #{net_forward.5} parent=11 // pred_check
          %p118 = pneg %p30
        $region14: #{net_forward.5} parent=11 // pred_check_branch
          %120 = sbr.rel (%p118) target = $region16
        $region15: #{net_forward.5} parent=11 // pred_region
          _
        $region16: #{net_forward.5} parent=11 // pred_fallthru
          _
        // Predicated region
        $region17: #{net_forward.5} parent=11 // pred_check
          %p121 = pneg %p77
        $region18: #{net_forward.5} parent=11 // pred_check_branch
          %123 = sbr.rel (%p121) target = $region20
        $region19: #{net_forward.5} parent=11 // pred_region
          _
        $region20: #{net_forward.5} parent=11 // pred_fallthru
          _
      $region12: #{net_forward.5} parent=5 // pred_fallthru
        _
      %p124 = scmp.lt.s32.totalorder %s9, 4
      // Predicated region
      $region21: #{net_forward.5} parent=5 // pred_check
        %p125 = pneg %p124
      $region22: #{net_forward.5} parent=5 // pred_check_branch
        %127 = sbr.rel (%p125) target = $region24
      $region23: #{net_forward.5} parent=5 // pred_region
        // Predicated region
        $region25: #{net_forward.5} parent=23 // pred_check
          %p128 = pneg %p50
        $region26: #{net_forward.5} parent=23 // pred_check_branch
          %130 = sbr.rel (%p128) target = $region28
        $region27: #{net_forward.5} parent=23 // pred_region
          %s131 = sand.u32 %s40, 1
          %s132 = sand.u32 %s40, 1
          %s133 = smul.addr %s132, 160
          %s134 = scalar_lea.vmem [#allocation2], %s133
          %s135 = smul.u32 4, %s9
          %s136 = ssub.s32 13, %s135
          %p137 = scmp.lt.s32.totalorder %s136, 4
          %s138 = scalar_select %p137, %s136, 4
          %s139 = smul.u32 640, %s138
          %p140 = scmp.ne.s32.totalorder 0, %s139
          %s141 = smul.addr %s135, 4
          %s142 = scalar_lea.vmem %s1, %s141
          %s143 = smul.u32 %s138, 4
          // Predicated region
          $region29: #{net_forward.5} parent=27 // pred_check
            %p144 = pneg %p140
          $region30: #{net_forward.5} parent=27 // pred_check_branch
            %146 = sbr.rel (%p144) target = $region32
          $region31: #{net_forward.5} parent=27 // pred_region
            %p147 = scmp.lt.u32.totalorder %s143, 8
            %p148 = pneg %p147
            // Predicated region
            $region33: #{net_forward.5} parent=31 // pred_check
              _
            $region34: #{net_forward.5} parent=31 // pred_check_branch
              %150 = sbr.rel (%p147) target = $region36
            $region35: #{net_forward.5} parent=31 // pred_region
              %s183 = sand.u32 %s143, 7
              %p184 = scmp.eq.s32.totalorder %s183, 0
              // Predicated region
              $region48: #{net_forward.5} parent=35 // pred_check
                %p185 = pneg %p184
              $region49: #{net_forward.5} parent=35 // pred_check_branch
                %187 = sbr.rel (%p185) target = $region51
              $region50: #{net_forward.5} parent=35 // pred_region
                %s188 = sshrl.u32 %s143, 3
                %s189 = sshrl.u32 %s188, 3
                // While loop
                $region52: #{net_forward.5} parent=50 // loop_pre_header
                  _
                $region53: #{net_forward.5} parent=50 // loop_header
                  %s193 = sphi 0, %s195
                  %p194 = scmp.ge.s32.totalorder %s193, %s189
                  %s198 = sphi 0, %s363
                  %s199 = sphi %s142, %s366
                  %s200 = sphi %s134, %s367
                $region54: #{net_forward.5} parent=50 // loop_header_branch
                  %197 = sbr.rel (%p194) target = $region58
                $region55: #{net_forward.5} parent=50 // loop_body
                  %v201 = vld [vmem:[%s199] sm:$0xff]
                  %202 = vst [vmem:[%s200] sm:$0xff] %v201
                  %v203 = vld [vmem:[%s199 + $0x8] sm:$0xff]
                  %204 = vst [vmem:[%s200 + $0x8] sm:$0xff] %v203
                  %v205 = vld [vmem:[%s199 + $0x10] sm:$0xff]
                  %206 = vst [vmem:[%s200 + $0x10] sm:$0xff] %v205
                  %v207 = vld [vmem:[%s199 + $0x18] sm:$0xff]
                  %208 = vst [vmem:[%s200 + $0x18] sm:$0xff] %v207
                  %v209 = vld [vmem:[%s199 + $0x20] sm:$0xff]
                  %210 = vst [vmem:[%s200 + $0x20] sm:$0xff] %v209
                  %v211 = vld [vmem:[%s199 + $0x28] sm:$0xff]
                  %212 = vst [vmem:[%s200 + $0x28] sm:$0xff] %v211
                  %v213 = vld [vmem:[%s199 + $0x30] sm:$0xff]
                  %214 = vst [vmem:[%s200 + $0x30] sm:$0xff] %v213
                  %v215 = vld [vmem:[%s199 + $0x38] sm:$0xff]
                  %216 = vst [vmem:[%s200 + $0x38] sm:$0xff] %v215
                  %v217 = vld [vmem:[%s199 + $0x34] sm:$0xff]
                  %218 = vst [vmem:[%s200 + $0x10] sm:$0xff] %v217
                  %v219 = vld [vmem:[%s199 + $0x3c] sm:$0xff]
                  %220 = vst [vmem:[%s200 + $0x18] sm:$0xff] %v219
                  %v221 = vld [vmem:[%s199 + $0x44] sm:$0xff]
                  %222 = vst [vmem:[%s200 + $0x20] sm:$0xff] %v221
                  %v223 = vld [vmem:[%s199 + $0x4c] sm:$0xff]
                  %224 = vst [vmem:[%s200 + $0x28] sm:$0xff] %v223
                  %v225 = vld [vmem:[%s199 + $0x54] sm:$0xff]
                  %226 = vst [vmem:[%s200 + $0x30] sm:$0xff] %v225
                  %v227 = vld [vmem:[%s199 + $0x5c] sm:$0xff]
                  %228 = vst [vmem:[%s200 + $0x38] sm:$0xff] %v227
                  %v229 = vld [vmem:[%s199 + $0x64] sm:$0xff]
                  %230 = vst [vmem:[%s200 + $0x40] sm:$0xff] %v229
                  %v231 = vld [vmem:[%s199 + $0x6c] sm:$0xff]
                  %232 = vst [vmem:[%s200 + $0x48] sm:$0xff] %v231
                  %v233 = vld [vmem:[%s199 + $0x68] sm:$0xff]
                  %234 = vst [vmem:[%s200 + $0x20] sm:$0xff] %v233
                  %v235 = vld [vmem:[%s199 + $0x70] sm:$0xff]
                  %236 = vst [vmem:[%s200 + $0x28] sm:$0xff] %v235
                  %v237 = vld [vmem:[%s199 + $0x78] sm:$0xff]
                  %238 = vst [vmem:[%s200 + $0x30] sm:$0xff] %v237
                  %v239 = vld [vmem:[%s199 + $0x80] sm:$0xff]
                  %240 = vst [vmem:[%s200 + $0x38] sm:$0xff] %v239
                  %v241 = vld [vmem:[%s199 + $0x88] sm:$0xff]
                  %242 = vst [vmem:[%s200 + $0x40] sm:$0xff] %v241
                  %v243 = vld [vmem:[%s199 + $0x90] sm:$0xff]
                  %244 = vst [vmem:[%s200 + $0x48] sm:$0xff] %v243
                  %v245 = vld [vmem:[%s199 + $0x98] sm:$0xff]
                  %246 = vst [vmem:[%s200 + $0x50] sm:$0xff] %v245
                  %v247 = vld [vmem:[%s199 + $0xa0] sm:$0xff]
                  %248 = vst [vmem:[%s200 + $0x58] sm:$0xff] %v247
                  %v249 = vld [vmem:[%s199 + $0x9c] sm:$0xff]
                  %250 = vst [vmem:[%s200 + $0x30] sm:$0xff] %v249
                  %v251 = vld [vmem:[%s199 + $0xa4] sm:$0xff]
                  %252 = vst [vmem:[%s200 + $0x38] sm:$0xff] %v251
                  %v253 = vld [vmem:[%s199 + $0xac] sm:$0xff]
                  %254 = vst [vmem:[%s200 + $0x40] sm:$0xff] %v253
                  %v255 = vld [vmem:[%s199 + $0xb4] sm:$0xff]
                  %256 = vst [vmem:[%s200 + $0x48] sm:$0xff] %v255
                  %v257 = vld [vmem:[%s199 + $0xbc] sm:$0xff]
                  %258 = vst [vmem:[%s200 + $0x50] sm:$0xff] %v257
                  %v259 = vld [vmem:[%s199 + $0xc4] sm:$0xff]
                  %260 = vst [vmem:[%s200 + $0x58] sm:$0xff] %v259
                  %v261 = vld [vmem:[%s199 + $0xcc] sm:$0xff]
                  %262 = vst [vmem:[%s200 + $0x60] sm:$0xff] %v261
                  %v263 = vld [vmem:[%s199 + $0xd4] sm:$0xff]
                  %264 = vst [vmem:[%s200 + $0x68] sm:$0xff] %v263
                  %v265 = vld [vmem:[%s199 + $0xd0] sm:$0xff]
                  %266 = vst [vmem:[%s200 + $0x40] sm:$0xff] %v265
                  %v267 = vld [vmem:[%s199 + $0xd8] sm:$0xff]
                  %268 = vst [vmem:[%s200 + $0x48] sm:$0xff] %v267
                  %v269 = vld [vmem:[%s199 + $0xe0] sm:$0xff]
                  %270 = vst [vmem:[%s200 + $0x50] sm:$0xff] %v269
                  %v271 = vld [vmem:[%s199 + $0xe8] sm:$0xff]
                  %272 = vst [vmem:[%s200 + $0x58] sm:$0xff] %v271
                  %v273 = vld [vmem:[%s199 + $0xf0] sm:$0xff]
                  %274 = vst [vmem:[%s200 + $0x60] sm:$0xff] %v273
                  %v275 = vld [vmem:[%s199 + $0xf8] sm:$0xff]
                  %276 = vst [vmem:[%s200 + $0x68] sm:$0xff] %v275
                  %v277 = vld [vmem:[%s199 + $0x100] sm:$0xff]
                  %278 = vst [vmem:[%s200 + $0x70] sm:$0xff] %v277
                  %v279 = vld [vmem:[%s199 + $0x108] sm:$0xff]
                  %280 = vst [vmem:[%s200 + $0x78] sm:$0xff] %v279
                  %v281 = vld [vmem:[%s199 + $0x104] sm:$0xff]
                  %282 = vst [vmem:[%s200 + $0x50] sm:$0xff] %v281
                  %v283 = vld [vmem:[%s199 + $0x10c] sm:$0xff]
                  %284 = vst [vmem:[%s200 + $0x58] sm:$0xff] %v283
                  %v285 = vld [vmem:[%s199 + $0x114] sm:$0xff]
                  %286 = vst [vmem:[%s200 + $0x60] sm:$0xff] %v285
                  %v287 = vld [vmem:[%s199 + $0x11c] sm:$0xff]
                  %288 = vst [vmem:[%s200 + $0x68] sm:$0xff] %v287
                  %v289 = vld [vmem:[%s199 + $0x124] sm:$0xff]
                  %290 = vst [vmem:[%s200 + $0x70] sm:$0xff] %v289
                  %v291 = vld [vmem:[%s199 + $0x12c] sm:$0xff]
                  %292 = vst [vmem:[%s200 + $0x78] sm:$0xff] %v291
                  %v293 = vld [vmem:[%s199 + $0x134] sm:$0xff]
                  %294 = vst [vmem:[%s200 + $0x80] sm:$0xff] %v293
                  %v295 = vld [vmem:[%s199 + $0x13c] sm:$0xff]
                  %296 = vst [vmem:[%s200 + $0x88] sm:$0xff] %v295
                  %v297 = vld [vmem:[%s199 + $0x138] sm:$0xff]
                  %298 = vst [vmem:[%s200 + $0x60] sm:$0xff] %v297
                  %v299 = vld [vmem:[%s199 + $0x140] sm:$0xff]
                  %300 = vst [vmem:[%s200 + $0x68] sm:$0xff] %v299
                  %v301 = vld [vmem:[%s199 + $0x148] sm:$0xff]
                  %302 = vst [vmem:[%s200 + $0x70] sm:$0xff] %v301
                  %v303 = vld [vmem:[%s199 + $0x150] sm:$0xff]
                  %304 = vst [vmem:[%s200 + $0x78] sm:$0xff] %v303
                  %v305 = vld [vmem:[%s199 + $0x158] sm:$0xff]
                  %306 = vst [vmem:[%s200 + $0x80] sm:$0xff] %v305
                  %v307 = vld [vmem:[%s199 + $0x160] sm:$0xff]
                  %308 = vst [vmem:[%s200 + $0x88] sm:$0xff] %v307
                  %v309 = vld [vmem:[%s199 + $0x168] sm:$0xff]
                  %310 = vst [vmem:[%s200 + $0x90] sm:$0xff] %v309
                  %v311 = vld [vmem:[%s199 + $0x170] sm:$0xff]
                  %312 = vst [vmem:[%s200 + $0x98] sm:$0xff] %v311
                  %v313 = vld [vmem:[%s199 + $0x16c] sm:$0xff]
                  %314 = vst [vmem:[%s200 + $0x70] sm:$0xff] %v313
                  %v315 = vld [vmem:[%s199 + $0x174] sm:$0xff]
                  %316 = vst [vmem:[%s200 + $0x78] sm:$0xff] %v315
                  %v317 = vld [vmem:[%s199 + $0x17c] sm:$0xff]
                  %318 = vst [vmem:[%s200 + $0x80] sm:$0xff] %v317
                  %v319 = vld [vmem:[%s199 + $0x184] sm:$0xff]
                  %320 = vst [vmem:[%s200 + $0x88] sm:$0xff] %v319
                  %v321 = vld [vmem:[%s199 + $0x18c] sm:$0xff]
                  %322 = vst [vmem:[%s200 + $0x90] sm:$0xff] %v321
                  %v323 = vld [vmem:[%s199 + $0x194] sm:$0xff]
                  %324 = vst [vmem:[%s200 + $0x98] sm:$0xff] %v323
                  %v325 = vld [vmem:[%s199 + $0x19c] sm:$0xff]
                  %326 = vst [vmem:[%s200 + $0xa0] sm:$0xff] %v325
                  %v327 = vld [vmem:[%s199 + $0x1a4] sm:$0xff]
                  %328 = vst [vmem:[%s200 + $0xa8] sm:$0xff] %v327
                  %v329 = vld [vmem:[%s199 + $0x1a0] sm:$0xff]
                  %330 = vst [vmem:[%s200 + $0x80] sm:$0xff] %v329
                  %v331 = vld [vmem:[%s199 + $0x1a8] sm:$0xff]
                  %332 = vst [vmem:[%s200 + $0x88] sm:$0xff] %v331
                  %v333 = vld [vmem:[%s199 + $0x1b0] sm:$0xff]
                  %334 = vst [vmem:[%s200 + $0x90] sm:$0xff] %v333
                  %v335 = vld [vmem:[%s199 + $0x1b8] sm:$0xff]
                  %336 = vst [vmem:[%s200 + $0x98] sm:$0xff] %v335
                  %v337 = vld [vmem:[%s199 + $0x1c0] sm:$0xff]
                  %338 = vst [vmem:[%s200 + $0xa0] sm:$0xff] %v337
                  %v339 = vld [vmem:[%s199 + $0x1c8] sm:$0xff]
                  %340 = vst [vmem:[%s200 + $0xa8] sm:$0xff] %v339
                  %v341 = vld [vmem:[%s199 + $0x1d0] sm:$0xff]
                  %342 = vst [vmem:[%s200 + $0xb0] sm:$0xff] %v341
                  %v343 = vld [vmem:[%s199 + $0x1d8] sm:$0xff]
                  %344 = vst [vmem:[%s200 + $0xb8] sm:$0xff] %v343
                  %v345 = vld [vmem:[%s199 + $0x1d4] sm:$0xff]
                  %346 = vst [vmem:[%s200 + $0x90] sm:$0xff] %v345
                  %v347 = vld [vmem:[%s199 + $0x1dc] sm:$0xff]
                  %348 = vst [vmem:[%s200 + $0x98] sm:$0xff] %v347
                  %v349 = vld [vmem:[%s199 + $0x1e4] sm:$0xff]
                  %350 = vst [vmem:[%s200 + $0xa0] sm:$0xff] %v349
                  %v351 = vld [vmem:[%s199 + $0x1ec] sm:$0xff]
                  %352 = vst [vmem:[%s200 + $0xa8] sm:$0xff] %v351
                  %v353 = vld [vmem:[%s199 + $0x1f4] sm:$0xff]
                  %354 = vst [vmem:[%s200 + $0xb0] sm:$0xff] %v353
                  %v355 = vld [vmem:[%s199 + $0x1fc] sm:$0xff]
                  %356 = vst [vmem:[%s200 + $0xb8] sm:$0xff] %v355
                  %v357 = vld [vmem:[%s199 + $0x204] sm:$0xff]
                  %358 = vst [vmem:[%s200 + $0xc0] sm:$0xff] %v357
                  %v359 = vld [vmem:[%s199 + $0x20c] sm:$0xff]
                  %360 = vst [vmem:[%s200 + $0xc8] sm:$0xff] %v359
                  %s361 = sadd.s32 1, %s198
                  %p362 = scmp.ge.s32.totalorder %s361, %s189
                  %s363 = scalar_select %p362, 0, %s361
                  %s364 = smul.u32 %s363, 64
                  %s365 = smul.u32 %s363, 64
                  %s366 = scalar_lea.vmem %s142, %s364
                  %s367 = scalar_lea.vmem %s134, %s365 [#allocation2]
                $region56: #{net_forward.5} parent=50 // loop_footer
                  %s195 = sadd.s32 %s193, 1
                $region57: #{net_forward.5} parent=50 // loop_footer_branch
                  %192 = sbr.rel target = $region53
                $region58: #{net_forward.5} parent=50 // loop_exit
                  _
                %s368 = sshrl.u32 %s188, 3
                %s369 = sand.u32 %s188, 7
                %s370 = smul.u32 %s368, 8
                %s371 = smul.u32 128, %s370
                %s372 = sshra.s32 %s371, 4
                %s373 = scalar_lea.vmem %s142, %s372
                %s374 = smul.u32 128, %s370
                %s375 = sshra.s32 %s374, 4
                %s376 = scalar_lea.vmem %s134, %s375 [#allocation2]
                // While loop
                $region59: #{net_forward.5} parent=50 // loop_pre_header
                  _
                $region60: #{net_forward.5} parent=50 // loop_header
                  %s380 = sphi 0, %s382
                  %p381 = scmp.ge.s32.totalorder %s380, %s369
                  %s385 = sphi 0, %s410
                  %s386 = sphi %s373, %s413
                  %s387 = sphi %s376, %s414
                $region61: #{net_forward.5} parent=50 // loop_header_branch
                  %384 = sbr.rel (%p381) target = $region65
                $region62: #{net_forward.5} parent=50 // loop_body
                  %v388 = vld [vmem:[%s386] sm:$0xff]
                  %389 = vst [vmem:[%s387] sm:$0xff] %v388
                  %v390 = vld [vmem:[%s386 + $0x34] sm:$0xff]
                  %391 = vst [vmem:[%s387 + $0x10] sm:$0xff] %v390
                  %v392 = vld [vmem:[%s386 + $0x68] sm:$0xff]
                  %393 = vst [vmem:[%s387 + $0x20] sm:$0xff] %v392
                  %v394 = vld [vmem:[%s386 + $0x9c] sm:$0xff]
                  %395 = vst [vmem:[%s387 + $0x30] sm:$0xff] %v394
                  %v396 = vld [vmem:[%s386 + $0xd0] sm:$0xff]
                  %397 = vst [vmem:[%s387 + $0x40] sm:$0xff] %v396
                  %v398 = vld [vmem:[%s386 + $0x104] sm:$0xff]
                  %399 = vst [vmem:[%s387 + $0x50] sm:$0xff] %v398
                  %v400 = vld [vmem:[%s386 + $0x138] sm:$0xff]
                  %401 = vst [vmem:[%s387 + $0x60] sm:$0xff] %v400
                  %v402 = vld [vmem:[%s386 + $0x16c] sm:$0xff]
                  %403 = vst [vmem:[%s387 + $0x70] sm:$0xff] %v402
                  %v404 = vld [vmem:[%s386 + $0x1a0] sm:$0xff]
                  %405 = vst [vmem:[%s387 + $0x80] sm:$0xff] %v404
                  %v406 = vld [vmem:[%s386 + $0x1d4] sm:$0xff]
                  %407 = vst [vmem:[%s387 + $0x90] sm:$0xff] %v406
                  %s408 = sadd.s32 1, %s385
                  %p409 = scmp.ge.s32.totalorder %s408, %s369
                  %s410 = scalar_select %p409, 0, %s408
                  %s411 = smul.u32 %s410, 8
                  %s412 = smul.u32 %s410, 8
                  %s413 = scalar_lea.vmem %s373, %s411
                  %s414 = scalar_lea.vmem %s376, %s412 [#allocation2]
                $region63: #{net_forward.5} parent=50 // loop_footer
                  %s382 = sadd.s32 %s380, 1
                $region64: #{net_forward.5} parent=50 // loop_footer_branch
                  %379 = sbr.rel target = $region60
                $region65: #{net_forward.5} parent=50 // loop_exit
                  _
              $region51: #{net_forward.5} parent=35 // pred_fallthru
                _
              %p415 = pneg %p184
              // Predicated region
              $region66: #{net_forward.5} parent=35 // pred_check
                _
              $region67: #{net_forward.5} parent=35 // pred_check_branch
                %417 = sbr.rel (%p184) target = $region69
              $region68: #{net_forward.5} parent=35 // pred_region
                %s418 = sand.u32 %s143, 7
                %s419 = ssub.s32 %s143, %s418
                %s420 = scalar_lea.vmem %s142, %s419
                %s421 = ssub.s32 %s143, %s418
                %s422 = scalar_lea.vmem %s134, %s421 [#allocation2]
                %s423 = sshrl.u32 %s143, 3
                %s424 = sshrl.u32 %s423, 3
                // While loop
                $region70: #{net_forward.5} parent=68 // loop_pre_header
                  _
                $region71: #{net_forward.5} parent=68 // loop_header
                  %s428 = sphi 0, %s430
                  %p429 = scmp.ge.s32.totalorder %s428, %s424
                  %s433 = sphi 0, %s598
                  %s434 = sphi %s142, %s601
                  %s435 = sphi %s134, %s602
                $region72: #{net_forward.5} parent=68 // loop_header_branch
                  %432 = sbr.rel (%p429) target = $region76
                $region73: #{net_forward.5} parent=68 // loop_body
                  %v436 = vld [vmem:[%s434] sm:$0xff]
                  %437 = vst [vmem:[%s435] sm:$0xff] %v436
                  %v438 = vld [vmem:[%s434 + $0x8] sm:$0xff]
                  %439 = vst [vmem:[%s435 + $0x8] sm:$0xff] %v438
                  %v440 = vld [vmem:[%s434 + $0x10] sm:$0xff]
                  %441 = vst [vmem:[%s435 + $0x10] sm:$0xff] %v440
                  %v442 = vld [vmem:[%s434 + $0x18] sm:$0xff]
                  %443 = vst [vmem:[%s435 + $0x18] sm:$0xff] %v442
                  %v444 = vld [vmem:[%s434 + $0x20] sm:$0xff]
                  %445 = vst [vmem:[%s435 + $0x20] sm:$0xff] %v444
                  %v446 = vld [vmem:[%s434 + $0x28] sm:$0xff]
                  %447 = vst [vmem:[%s435 + $0x28] sm:$0xff] %v446
                  %v448 = vld [vmem:[%s434 + $0x30] sm:$0xff]
                  %449 = vst [vmem:[%s435 + $0x30] sm:$0xff] %v448
                  %v450 = vld [vmem:[%s434 + $0x38] sm:$0xff]
                  %451 = vst [vmem:[%s435 + $0x38] sm:$0xff] %v450
                  %v452 = vld [vmem:[%s434 + $0x34] sm:$0xff]
                  %453 = vst [vmem:[%s435 + $0x10] sm:$0xff] %v452
                  %v454 = vld [vmem:[%s434 + $0x3c] sm:$0xff]
                  %455 = vst [vmem:[%s435 + $0x18] sm:$0xff] %v454
                  %v456 = vld [vmem:[%s434 + $0x44] sm:$0xff]
                  %457 = vst [vmem:[%s435 + $0x20] sm:$0xff] %v456
                  %v458 = vld [vmem:[%s434 + $0x4c] sm:$0xff]
                  %459 = vst [vmem:[%s435 + $0x28] sm:$0xff] %v458
                  %v460 = vld [vmem:[%s434 + $0x54] sm:$0xff]
                  %461 = vst [vmem:[%s435 + $0x30] sm:$0xff] %v460
                  %v462 = vld [vmem:[%s434 + $0x5c] sm:$0xff]
                  %463 = vst [vmem:[%s435 + $0x38] sm:$0xff] %v462
                  %v464 = vld [vmem:[%s434 + $0x64] sm:$0xff]
                  %465 = vst [vmem:[%s435 + $0x40] sm:$0xff] %v464
                  %v466 = vld [vmem:[%s434 + $0x6c] sm:$0xff]
                  %467 = vst [vmem:[%s435 + $0x48] sm:$0xff] %v466
                  %v468 = vld [vmem:[%s434 + $0x68] sm:$0xff]
                  %469 = vst [vmem:[%s435 + $0x20] sm:$0xff] %v468
                  %v470 = vld [vmem:[%s434 + $0x70] sm:$0xff]
                  %471 = vst [vmem:[%s435 + $0x28] sm:$0xff] %v470
                  %v472 = vld [vmem:[%s434 + $0x78] sm:$0xff]
                  %473 = vst [vmem:[%s435 + $0x30] sm:$0xff] %v472
                  %v474 = vld [vmem:[%s434 + $0x80] sm:$0xff]
                  %475 = vst [vmem:[%s435 + $0x38] sm:$0xff] %v474
                  %v476 = vld [vmem:[%s434 + $0x88] sm:$0xff]
                  %477 = vst [vmem:[%s435 + $0x40] sm:$0xff] %v476
                  %v478 = vld [vmem:[%s434 + $0x90] sm:$0xff]
                  %479 = vst [vmem:[%s435 + $0x48] sm:$0xff] %v478
                  %v480 = vld [vmem:[%s434 + $0x98] sm:$0xff]
                  %481 = vst [vmem:[%s435 + $0x50] sm:$0xff] %v480
                  %v482 = vld [vmem:[%s434 + $0xa0] sm:$0xff]
                  %483 = vst [vmem:[%s435 + $0x58] sm:$0xff] %v482
                  %v484 = vld [vmem:[%s434 + $0x9c] sm:$0xff]
                  %485 = vst [vmem:[%s435 + $0x30] sm:$0xff] %v484
                  %v486 = vld [vmem:[%s434 + $0xa4] sm:$0xff]
                  %487 = vst [vmem:[%s435 + $0x38] sm:$0xff] %v486
                  %v488 = vld [vmem:[%s434 + $0xac] sm:$0xff]
                  %489 = vst [vmem:[%s435 + $0x40] sm:$0xff] %v488
                  %v490 = vld [vmem:[%s434 + $0xb4] sm:$0xff]
                  %491 = vst [vmem:[%s435 + $0x48] sm:$0xff] %v490
                  %v492 = vld [vmem:[%s434 + $0xbc] sm:$0xff]
                  %493 = vst [vmem:[%s435 + $0x50] sm:$0xff] %v492
                  %v494 = vld [vmem:[%s434 + $0xc4] sm:$0xff]
                  %495 = vst [vmem:[%s435 + $0x58] sm:$0xff] %v494
                  %v496 = vld [vmem:[%s434 + $0xcc] sm:$0xff]
                  %497 = vst [vmem:[%s435 + $0x60] sm:$0xff] %v496
                  %v498 = vld [vmem:[%s434 + $0xd4] sm:$0xff]
                  %499 = vst [vmem:[%s435 + $0x68] sm:$0xff] %v498
                  %v500 = vld [vmem:[%s434 + $0xd0] sm:$0xff]
                  %501 = vst [vmem:[%s435 + $0x40] sm:$0xff] %v500
                  %v502 = vld [vmem:[%s434 + $0xd8] sm:$0xff]
                  %503 = vst [vmem:[%s435 + $0x48] sm:$0xff] %v502
                  %v504 = vld [vmem:[%s434 + $0xe0] sm:$0xff]
                  %505 = vst [vmem:[%s435 + $0x50] sm:$0xff] %v504
                  %v506 = vld [vmem:[%s434 + $0xe8] sm:$0xff]
                  %507 = vst [vmem:[%s435 + $0x58] sm:$0xff] %v506
                  %v508 = vld [vmem:[%s434 + $0xf0] sm:$0xff]
                  %509 = vst [vmem:[%s435 + $0x60] sm:$0xff] %v508
                  %v510 = vld [vmem:[%s434 + $0xf8] sm:$0xff]
                  %511 = vst [vmem:[%s435 + $0x68] sm:$0xff] %v510
                  %v512 = vld [vmem:[%s434 + $0x100] sm:$0xff]
                  %513 = vst [vmem:[%s435 + $0x70] sm:$0xff] %v512
                  %v514 = vld [vmem:[%s434 + $0x108] sm:$0xff]
                  %515 = vst [vmem:[%s435 + $0x78] sm:$0xff] %v514
                  %v516 = vld [vmem:[%s434 + $0x104] sm:$0xff]
                  %517 = vst [vmem:[%s435 + $0x50] sm:$0xff] %v516
                  %v518 = vld [vmem:[%s434 + $0x10c] sm:$0xff]
                  %519 = vst [vmem:[%s435 + $0x58] sm:$0xff] %v518
                  %v520 = vld [vmem:[%s434 + $0x114] sm:$0xff]
                  %521 = vst [vmem:[%s435 + $0x60] sm:$0xff] %v520
                  %v522 = vld [vmem:[%s434 + $0x11c] sm:$0xff]
                  %523 = vst [vmem:[%s435 + $0x68] sm:$0xff] %v522
                  %v524 = vld [vmem:[%s434 + $0x124] sm:$0xff]
                  %525 = vst [vmem:[%s435 + $0x70] sm:$0xff] %v524
                  %v526 = vld [vmem:[%s434 + $0x12c] sm:$0xff]
                  %527 = vst [vmem:[%s435 + $0x78] sm:$0xff] %v526
                  %v528 = vld [vmem:[%s434 + $0x134] sm:$0xff]
                  %529 = vst [vmem:[%s435 + $0x80] sm:$0xff] %v528
                  %v530 = vld [vmem:[%s434 + $0x13c] sm:$0xff]
                  %531 = vst [vmem:[%s435 + $0x88] sm:$0xff] %v530
                  %v532 = vld [vmem:[%s434 + $0x138] sm:$0xff]
                  %533 = vst [vmem:[%s435 + $0x60] sm:$0xff] %v532
                  %v534 = vld [vmem:[%s434 + $0x140] sm:$0xff]
                  %535 = vst [vmem:[%s435 + $0x68] sm:$0xff] %v534
                  %v536 = vld [vmem:[%s434 + $0x148] sm:$0xff]
                  %537 = vst [vmem:[%s435 + $0x70] sm:$0xff] %v536
                  %v538 = vld [vmem:[%s434 + $0x150] sm:$0xff]
                  %539 = vst [vmem:[%s435 + $0x78] sm:$0xff] %v538
                  %v540 = vld [vmem:[%s434 + $0x158] sm:$0xff]
                  %541 = vst [vmem:[%s435 + $0x80] sm:$0xff] %v540
                  %v542 = vld [vmem:[%s434 + $0x160] sm:$0xff]
                  %543 = vst [vmem:[%s435 + $0x88] sm:$0xff] %v542
                  %v544 = vld [vmem:[%s434 + $0x168] sm:$0xff]
                  %545 = vst [vmem:[%s435 + $0x90] sm:$0xff] %v544
                  %v546 = vld [vmem:[%s434 + $0x170] sm:$0xff]
                  %547 = vst [vmem:[%s435 + $0x98] sm:$0xff] %v546
                  %v548 = vld [vmem:[%s434 + $0x16c] sm:$0xff]
                  %549 = vst [vmem:[%s435 + $0x70] sm:$0xff] %v548
                  %v550 = vld [vmem:[%s434 + $0x174] sm:$0xff]
                  %551 = vst [vmem:[%s435 + $0x78] sm:$0xff] %v550
                  %v552 = vld [vmem:[%s434 + $0x17c] sm:$0xff]
                  %553 = vst [vmem:[%s435 + $0x80] sm:$0xff] %v552
                  %v554 = vld [vmem:[%s434 + $0x184] sm:$0xff]
                  %555 = vst [vmem:[%s435 + $0x88] sm:$0xff] %v554
                  %v556 = vld [vmem:[%s434 + $0x18c] sm:$0xff]
                  %557 = vst [vmem:[%s435 + $0x90] sm:$0xff] %v556
                  %v558 = vld [vmem:[%s434 + $0x194] sm:$0xff]
                  %559 = vst [vmem:[%s435 + $0x98] sm:$0xff] %v558
                  %v560 = vld [vmem:[%s434 + $0x19c] sm:$0xff]
                  %561 = vst [vmem:[%s435 + $0xa0] sm:$0xff] %v560
                  %v562 = vld [vmem:[%s434 + $0x1a4] sm:$0xff]
                  %563 = vst [vmem:[%s435 + $0xa8] sm:$0xff] %v562
                  %v564 = vld [vmem:[%s434 + $0x1a0] sm:$0xff]
                  %565 = vst [vmem:[%s435 + $0x80] sm:$0xff] %v564
                  %v566 = vld [vmem:[%s434 + $0x1a8] sm:$0xff]
                  %567 = vst [vmem:[%s435 + $0x88] sm:$0xff] %v566
                  %v568 = vld [vmem:[%s434 + $0x1b0] sm:$0xff]
                  %569 = vst [vmem:[%s435 + $0x90] sm:$0xff] %v568
                  %v570 = vld [vmem:[%s434 + $0x1b8] sm:$0xff]
                  %571 = vst [vmem:[%s435 + $0x98] sm:$0xff] %v570
                  %v572 = vld [vmem:[%s434 + $0x1c0] sm:$0xff]
                  %573 = vst [vmem:[%s435 + $0xa0] sm:$0xff] %v572
                  %v574 = vld [vmem:[%s434 + $0x1c8] sm:$0xff]
                  %575 = vst [vmem:[%s435 + $0xa8] sm:$0xff] %v574
                  %v576 = vld [vmem:[%s434 + $0x1d0] sm:$0xff]
                  %577 = vst [vmem:[%s435 + $0xb0] sm:$0xff] %v576
                  %v578 = vld [vmem:[%s434 + $0x1d8] sm:$0xff]
                  %579 = vst [vmem:[%s435 + $0xb8] sm:$0xff] %v578
                  %v580 = vld [vmem:[%s434 + $0x1d4] sm:$0xff]
                  %581 = vst [vmem:[%s435 + $0x90] sm:$0xff] %v580
                  %v582 = vld [vmem:[%s434 + $0x1dc] sm:$0xff]
                  %583 = vst [vmem:[%s435 + $0x98] sm:$0xff] %v582
                  %v584 = vld [vmem:[%s434 + $0x1e4] sm:$0xff]
                  %585 = vst [vmem:[%s435 + $0xa0] sm:$0xff] %v584
                  %v586 = vld [vmem:[%s434 + $0x1ec] sm:$0xff]
                  %587 = vst [vmem:[%s435 + $0xa8] sm:$0xff] %v586
                  %v588 = vld [vmem:[%s434 + $0x1f4] sm:$0xff]
                  %589 = vst [vmem:[%s435 + $0xb0] sm:$0xff] %v588
                  %v590 = vld [vmem:[%s434 + $0x1fc] sm:$0xff]
                  %591 = vst [vmem:[%s435 + $0xb8] sm:$0xff] %v590
                  %v592 = vld [vmem:[%s434 + $0x204] sm:$0xff]
                  %593 = vst [vmem:[%s435 + $0xc0] sm:$0xff] %v592
                  %v594 = vld [vmem:[%s434 + $0x20c] sm:$0xff]
                  %595 = vst [vmem:[%s435 + $0xc8] sm:$0xff] %v594
                  %s596 = sadd.s32 1, %s433
                  %p597 = scmp.ge.s32.totalorder %s596, %s424
                  %s598 = scalar_select %p597, 0, %s596
                  %s599 = smul.u32 %s598, 64
                  %s600 = smul.u32 %s598, 64
                  %s601 = scalar_lea.vmem %s142, %s599
                  %s602 = scalar_lea.vmem %s134, %s600 [#allocation2]
                $region74: #{net_forward.5} parent=68 // loop_footer
                  %s430 = sadd.s32 %s428, 1
                $region75: #{net_forward.5} parent=68 // loop_footer_branch
                  %427 = sbr.rel target = $region71
                $region76: #{net_forward.5} parent=68 // loop_exit
                  _
                %s603 = sshrl.u32 %s423, 3
                %s604 = sand.u32 %s423, 7
                %s605 = smul.u32 %s603, 8
                %s606 = smul.u32 128, %s605
                %s607 = sshra.s32 %s606, 4
                %s608 = scalar_lea.vmem %s142, %s607
                %s609 = smul.u32 128, %s605
                %s610 = sshra.s32 %s609, 4
                %s611 = scalar_lea.vmem %s134, %s610 [#allocation2]
                // While loop
                $region77: #{net_forward.5} parent=68 // loop_pre_header
                  _
                $region78: #{net_forward.5} parent=68 // loop_header
                  %s615 = sphi 0, %s617
                  %p616 = scmp.ge.s32.totalorder %s615, %s604
                  %s620 = sphi 0, %s645
                  %s621 = sphi %s608, %s648
                  %s622 = sphi %s611, %s649
                $region79: #{net_forward.5} parent=68 // loop_header_branch
                  %619 = sbr.rel (%p616) target = $region83
                $region80: #{net_forward.5} parent=68 // loop_body
                  %v623 = vld [vmem:[%s621] sm:$0xff]
                  %624 = vst [vmem:[%s622] sm:$0xff] %v623
                  %v625 = vld [vmem:[%s621 + $0x34] sm:$0xff]
                  %626 = vst [vmem:[%s622 + $0x10] sm:$0xff] %v625
                  %v627 = vld [vmem:[%s621 + $0x68] sm:$0xff]
                  %628 = vst [vmem:[%s622 + $0x20] sm:$0xff] %v627
                  %v629 = vld [vmem:[%s621 + $0x9c] sm:$0xff]
                  %630 = vst [vmem:[%s622 + $0x30] sm:$0xff] %v629
                  %v631 = vld [vmem:[%s621 + $0xd0] sm:$0xff]
                  %632 = vst [vmem:[%s622 + $0x40] sm:$0xff] %v631
                  %v633 = vld [vmem:[%s621 + $0x104] sm:$0xff]
                  %634 = vst [vmem:[%s622 + $0x50] sm:$0xff] %v633
                  %v635 = vld [vmem:[%s621 + $0x138] sm:$0xff]
                  %636 = vst [vmem:[%s622 + $0x60] sm:$0xff] %v635
                  %v637 = vld [vmem:[%s621 + $0x16c] sm:$0xff]
                  %638 = vst [vmem:[%s622 + $0x70] sm:$0xff] %v637
                  %v639 = vld [vmem:[%s621 + $0x1a0] sm:$0xff]
                  %640 = vst [vmem:[%s622 + $0x80] sm:$0xff] %v639
                  %v641 = vld [vmem:[%s621 + $0x1d4] sm:$0xff]
                  %642 = vst [vmem:[%s622 + $0x90] sm:$0xff] %v641
                  %s643 = sadd.s32 1, %s620
                  %p644 = scmp.ge.s32.totalorder %s643, %s604
                  %s645 = scalar_select %p644, 0, %s643
                  %s646 = smul.u32 %s645, 8
                  %s647 = smul.u32 %s645, 8
                  %s648 = scalar_lea.vmem %s608, %s646
                  %s649 = scalar_lea.vmem %s611, %s647 [#allocation2]
                $region81: #{net_forward.5} parent=68 // loop_footer
                  %s617 = sadd.s32 %s615, 1
                $region82: #{net_forward.5} parent=68 // loop_footer_branch
                  %614 = sbr.rel target = $region78
                $region83: #{net_forward.5} parent=68 // loop_exit
                  _
                %s650 = sshllo.u32 0, %s418
                loop: start=0, step=1, limit=1
                $region84: #{net_forward.5} parent=68 // loop_pre_header
                  _
                $region85: #{net_forward.5} parent=68 // loop_header
                  %s652 = sphi 0, %s656
                  %p653 = scmp.ge.s32.totalorder %s652, 1
                  %s657 = sphi %s420, %s420
                  %s658 = sphi %s422, %s422
                $region86: #{net_forward.5} parent=68 // loop_header_branch
                  %655 = sbr.rel (%p653) target = $region90
                $region87: #{net_forward.5} parent=68 // loop_body
                  %v659 = vld [vmem:[%s657] sm:%s650]
                  %660 = vst [vmem:[%s658] sm:%s650] %v659
                  %v661 = vld [vmem:[%s657 + $0x34] sm:%s650]
                  %662 = vst [vmem:[%s658 + $0x10] sm:%s650] %v661
                  %v663 = vld [vmem:[%s657 + $0x68] sm:%s650]
                  %664 = vst [vmem:[%s658 + $0x20] sm:%s650] %v663
                  %v665 = vld [vmem:[%s657 + $0x9c] sm:%s650]
                  %666 = vst [vmem:[%s658 + $0x30] sm:%s650] %v665
                  %v667 = vld [vmem:[%s657 + $0xd0] sm:%s650]
                  %668 = vst [vmem:[%s658 + $0x40] sm:%s650] %v667
                  %v669 = vld [vmem:[%s657 + $0x104] sm:%s650]
                  %670 = vst [vmem:[%s658 + $0x50] sm:%s650] %v669
                  %v671 = vld [vmem:[%s657 + $0x138] sm:%s650]
                  %672 = vst [vmem:[%s658 + $0x60] sm:%s650] %v671
                  %v673 = vld [vmem:[%s657 + $0x16c] sm:%s650]
                  %674 = vst [vmem:[%s658 + $0x70] sm:%s650] %v673
                  %v675 = vld [vmem:[%s657 + $0x1a0] sm:%s650]
                  %676 = vst [vmem:[%s658 + $0x80] sm:%s650] %v675
                  %v677 = vld [vmem:[%s657 + $0x1d4] sm:%s650]
                  %678 = vst [vmem:[%s658 + $0x90] sm:%s650] %v677
                $region88: #{net_forward.5} parent=68 // loop_footer
                  %s656 = sadd.s32 1, %s652
                $region89: #{net_forward.5} parent=68 // loop_footer_branch
                  %651 = sbr.rel target = $region85
                $region90: #{net_forward.5} parent=68 // loop_exit
                  _
              $region69: #{net_forward.5} parent=35 // pred_fallthru
                _
            $region36: #{net_forward.5} parent=31 // pred_fallthru
              _
            // Predicated region
            $region37: #{net_forward.5} parent=31 // pred_check
              %p151 = pneg %p147
            $region38: #{net_forward.5} parent=31 // pred_check_branch
              %153 = sbr.rel (%p151) target = $region40
            $region39: #{net_forward.5} parent=31 // pred_region
              %s154 = sshllo.u32 0, %s143
              loop: start=0, step=1, limit=1
              $region41: #{net_forward.5} parent=39 // loop_pre_header
                _
              $region42: #{net_forward.5} parent=39 // loop_header
                %s156 = sphi 0, %s160
                %p157 = scmp.ge.s32.totalorder %s156, 1
                %s161 = sphi %s142, %s142
                %s162 = sphi %s134, %s134
              $region43: #{net_forward.5} parent=39 // loop_header_branch
                %159 = sbr.rel (%p157) target = $region47
              $region44: #{net_forward.5} parent=39 // loop_body
                %v163 = vld [vmem:[%s161] sm:%s154]
                %164 = vst [vmem:[%s162] sm:%s154] %v163
                %v165 = vld [vmem:[%s161 + $0x34] sm:%s154]
                %166 = vst [vmem:[%s162 + $0x10] sm:%s154] %v165
                %v167 = vld [vmem:[%s161 + $0x68] sm:%s154]
                %168 = vst [vmem:[%s162 + $0x20] sm:%s154] %v167
                %v169 = vld [vmem:[%s161 + $0x9c] sm:%s154]
                %170 = vst [vmem:[%s162 + $0x30] sm:%s154] %v169
                %v171 = vld [vmem:[%s161 + $0xd0] sm:%s154]
                %172 = vst [vmem:[%s162 + $0x40] sm:%s154] %v171
                %v173 = vld [vmem:[%s161 + $0x104] sm:%s154]
                %174 = vst [vmem:[%s162 + $0x50] sm:%s154] %v173
                %v175 = vld [vmem:[%s161 + $0x138] sm:%s154]
                %176 = vst [vmem:[%s162 + $0x60] sm:%s154] %v175
                %v177 = vld [vmem:[%s161 + $0x16c] sm:%s154]
                %178 = vst [vmem:[%s162 + $0x70] sm:%s154] %v177
                %v179 = vld [vmem:[%s161 + $0x1a0] sm:%s154]
                %180 = vst [vmem:[%s162 + $0x80] sm:%s154] %v179
                %v181 = vld [vmem:[%s161 + $0x1d4] sm:%s154]
                %182 = vst [vmem:[%s162 + $0x90] sm:%s154] %v181
              $region45: #{net_forward.5} parent=39 // loop_footer
                %s160 = sadd.s32 1, %s156
              $region46: #{net_forward.5} parent=39 // loop_footer_branch
                %155 = sbr.rel target = $region42
              $region47: #{net_forward.5} parent=39 // loop_exit
                _
            $region40: #{net_forward.5} parent=31 // pred_fallthru
              _
          $region32: #{net_forward.5} parent=27 // pred_fallthru
            _
          %679 = vnop
        $region28: #{net_forward.5} parent=23 // pred_fallthru
          _
      $region24: #{net_forward.5} parent=5 // pred_fallthru
        _
      %p680 = scmp.le.s32.totalorder 1, %s9
      %p681 = scmp.lt.s32.totalorder %s9, 5
      %p682 = pnand %p680, %p681
      %p683 = pneg %p682
      // Predicated region
      $region91: #{net_forward.5} parent=5 // pred_check
        _
      $region92: #{net_forward.5} parent=5 // pred_check_branch
        %685 = sbr.rel (%p682) target = $region94
      $region93: #{net_forward.5} parent=5 // pred_region
        %s686 = ssub.s32 %s9, 1
        %s687 = sand.u32 %s43, 1
        %s688 = sand.u32 %s43, 1
        %s689 = smul.addr %s688, 160
        %s690 = scalar_lea.vmem [#allocation2], %s689
        // Predicated region
        $region95: #{net_forward.5} parent=93 // pred_check
          %p691 = pneg %p56
        $region96: #{net_forward.5} parent=93 // pred_check_branch
          %693 = sbr.rel (%p691) target = $region98
        $region97: #{net_forward.5} parent=93 // pred_region
          _
        $region98: #{net_forward.5} parent=93 // pred_fallthru
          _
        %p694 = pneg %p30
        %p695 = pneg %p27
        %s696 = sand.u32 %s43, 1
        %s697 = sand.u32 %s43, 1
        %s698 = smul.addr %s697, 160
        %s699 = scalar_lea.vmem [#allocation2], %s698
        %p700 = pneg %p56
        %p701 = pneg %p53
        %p702 = pneg %p77
        %p703 = pneg %p74
        %p704 = pneg %p103
        %p705 = pneg %p100
        %s706 = sand.u32 %s90, 1
        %s707 = sand.u32 %s90, 1
        %s708 = smul.addr %s707, 32
        %s709 = scalar_lea.vmem [#allocation3], %s708
        %s710 = smul.u32 4, %s14
        %s711 = ssub.s32 13, %s710
        %p712 = scmp.lt.s32.totalorder %s711, 4
        %s713 = scalar_select %p712, %s711, 4
        %s714 = smul.u32 640, %s713
        %s715 = smul.u32 4, %s14
        %s716 = ssub.s32 13, %s715
        %p717 = scmp.lt.s32.totalorder %s716, 4
        %s718 = scalar_select %p717, %s716, 4
        %s719 = smul.u32 128, %s718
        %v721 = vld [vmem:[%s0] sm:$0x7]
        %v722 = vld [vmem:[%s690] sm:$0xff]
        %v723 = vld [vmem:[%s690 + $0x8] sm:$0xff]
        %v724 = vld [vmem:[%s690 + $0x10] sm:$0xff]
        %v725 = vld [vmem:[%s690 + $0x18] sm:$0xff]
        %v726 = vld [vmem:[%s690 + $0x20] sm:$0xff]
        %v727 = vld [vmem:[%s690 + $0x28] sm:$0xff]
        %v728 = vld [vmem:[%s690 + $0x30] sm:$0xff]
        %v729 = vld [vmem:[%s690 + $0x38] sm:$0xff]
        %v730 = vld [vmem:[%s690 + $0x40] sm:$0xff]
        %v731 = vld [vmem:[%s690 + $0x48] sm:$0xff]
        %v732 = vld [vmem:[%s690 + $0x50] sm:$0xff]
        %v733 = vld [vmem:[%s690 + $0x58] sm:$0xff]
        %v734 = vld [vmem:[%s690 + $0x60] sm:$0xff]
        %v735 = vld [vmem:[%s690 + $0x68] sm:$0xff]
        %v736 = vld [vmem:[%s690 + $0x70] sm:$0xff]
        %v737 = vld [vmem:[%s690 + $0x78] sm:$0xff]
        %v738 = vld [vmem:[%s690 + $0x80] sm:$0xff]
        %v739 = vld [vmem:[%s690 + $0x88] sm:$0xff]
        %v740 = vld [vmem:[%s690 + $0x90] sm:$0x33]
        %v741 = vld [vmem:[%s690 + $0x98] sm:$0x33]
        %v742 = vld [vmem:[%s2] sm:$0x3f]
        %744 = vset.pattern.permute.xlu0 0
        %745 = vperm.xlu0 %744, %v742
        %v746 = vpop.permute.xlu0 %745
        %v768 = vunpack.c.l.b16 %v722
        %v769 = vunpack.c.h.b16 %v722
        %v770 = vunpack.c.l.b16 %v723
        %v771 = vunpack.c.h.b16 %v723
        %v772 = vunpack.c.l.b16 %v724
        %v773 = vunpack.c.h.b16 %v724
        %v774 = vunpack.c.l.b16 %v725
        %v775 = vunpack.c.h.b16 %v725
        %v776 = vunpack.c.l.b16 %v726
        %v777 = vunpack.c.h.b16 %v726
        %v778 = vunpack.c.l.b16 %v727
        %v779 = vunpack.c.h.b16 %v727
        %v780 = vunpack.c.l.b16 %v728
        %v781 = vunpack.c.h.b16 %v728
        %v782 = vunpack.c.l.b16 %v729
        %v783 = vunpack.c.h.b16 %v729
        %v784 = vunpack.c.l.b16 %v730
        %v785 = vunpack.c.h.b16 %v730
        %v786 = vunpack.c.l.b16 %v731
        %v787 = vunpack.c.h.b16 %v731
        %v788 = vunpack.c.l.b16 %v732
        %v789 = vunpack.c.h.b16 %v732
        %v790 = vunpack.c.l.b16 %v733
        %v791 = vunpack.c.h.b16 %v733
        %v792 = vunpack.c.l.b16 %v734
        %v793 = vunpack.c.h.b16 %v734
        %v794 = vunpack.c.l.b16 %v735
        %v795 = vunpack.c.h.b16 %v735
        %v796 = vunpack.c.l.b16 %v736
        %v797 = vunpack.c.h.b16 %v736
        %v798 = vunpack.c.l.b16 %v737
        %v799 = vunpack.c.h.b16 %v737
        %v800 = vunpack.c.l.b16 %v738
        %v801 = vunpack.c.h.b16 %v738
        %v802 = vunpack.c.l.b16 %v739
        %v803 = vunpack.c.h.b16 %v739
        %v804 = vunpack.c.l.b16 %v740
        %v805 = vunpack.c.h.b16 %v740
        %v806 = vunpack.c.l.b16 %v741
        %v807 = vunpack.c.h.b16 %v741
        %v808 = vpack.c.b16 %v772, %v768
        %v809 = vpack.c.b16 %v773, %v769
        %v810 = vpack.c.b16 %v774, %v770
        %v811 = vpack.c.b16 %v775, %v771
        %v812 = vpack.c.b16 %v780, %v776
        %v813 = vpack.c.b16 %v781, %v777
        %v814 = vpack.c.b16 %v782, %v778
        %v815 = vpack.c.b16 %v783, %v779
        %v816 = vpack.c.b16 %v788, %v784
        %v817 = vpack.c.b16 %v789, %v785
        %v818 = vpack.c.b16 %v790, %v786
        %v819 = vpack.c.b16 %v791, %v787
        %v820 = vpack.c.b16 %v796, %v792
        %v821 = vpack.c.b16 %v797, %v793
        %v822 = vpack.c.b16 %v798, %v794
        %v823 = vpack.c.b16 %v799, %v795
        %v824 = vpack.c.b16 %v804, %v800
        %v825 = vpack.c.b16 %v805, %v801
        %v826 = vpack.c.b16 %v806, %v802
        %v827 = vpack.c.b16 %v807, %v803
        %vm844 = vcmask 613376
        %v846 = vsel %vm844, %v721, 0
        %vm848 = vcmask 1044480
        %vm849 = vcmask 1045504
        %v850 = vsel %vm848, 4294967295, 65535
        %v851 = vsel %vm849, %v850, 0
        %v853 = vand.u32 %v824, %v851
        %v856 = vand.u32 %v825, %v851
        %v859 = vand.u32 %v826, %v851
        %v862 = vand.u32 %v827, %v851
        %864 = vmatprep.subr.bf16.mxu0 %v809
        %865 = vmatpush1.bf16.msra.mxu0 %v808
        %866 = vmatprep.subr.bf16.mxu0 %v813
        %867 = vmatpush1.bf16.msra.mxu0 %v812
        %868 = vmatprep.subr.bf16.mxu0 %v817
        %869 = vmatpush1.bf16.msra.mxu0 %v816
        %870 = vmatprep.subr.bf16.mxu0 %v821
        %871 = vmatpush1.bf16.msra.mxu0 %v820
        %872 = vmatprep.subr.bf16.mxu0 %v856
        %873 = vmatpush1.bf16.msra.mxu0 %v853
        %874 = vmatprep.subr.bf16.mxu0 0
        %875 = vmatpush1.bf16.msra.mxu0 0
        %876 = vmatprep.subr.bf16.mxu0 0
        %877 = vmatpush1.bf16.msra.mxu0 0
        %878 = vmatprep.subr.bf16.mxu0 0
        %879 = vmatpush1.bf16.msra.mxu0 0
        %880 = vmatprep.subr.bf16.mxu0 0
        %881 = vmatpush1.bf16.msra.mxu0 0
        %882 = vmatprep.subr.bf16.mxu0 0
        %883 = vmatpush1.bf16.msra.mxu0 0
        %884 = vmatprep.subr.bf16.mxu0 0
        %885 = vmatpush1.bf16.msra.mxu0 0
        %886 = vmatprep.subr.bf16.mxu0 0
        %887 = vmatpush1.bf16.msra.mxu0 0
        %888 = vmatprep.subr.bf16.mxu0 0
        %889 = vmatpush1.bf16.msra.mxu0 0
        %890 = vmatprep.subr.bf16.mxu0 0
        %891 = vmatpush1.bf16.msra.mxu0 0
        %892 = vmatprep.subr.bf16.mxu0 0
        %893 = vmatpush1.bf16.msra.mxu0 0
        %894 = vmatprep.subr.bf16.mxu0 0
        %895 = vmatpush1.bf16.msra.mxu0 0
        %896 = vmatprep.mubr.bf16.mxu0 0
        %897 = vmatmul.mubr.bf16.gmra.mrb[0].mxu0 %v846
        %v898 = vpop.f32.mrb[0].mxu0
        %v899 = vadd.f32 %v746, %v898
        %v900 = vpop.f32.mrb[0].mxu0
        %v901 = vadd.f32 %v746, %v900
        %v902 = vpop.f32.mrb[0].mxu0
        %v903 = vpop.f32.mrb[0].mxu0
        %904 = vdwg.mxu0
        %905 = vmatprep.subr.bf16.mxu0 %v811
        %906 = vmatpush1.bf16.msra.mxu0 %v810
        %907 = vmatprep.subr.bf16.mxu0 %v815
        %908 = vmatpush1.bf16.msra.mxu0 %v814
        %909 = vmatprep.subr.bf16.mxu0 %v819
        %910 = vmatpush1.bf16.msra.mxu0 %v818
        %911 = vmatprep.subr.bf16.mxu0 %v823
        %912 = vmatpush1.bf16.msra.mxu0 %v822
        %913 = vmatprep.subr.bf16.mxu0 %v862
        %914 = vmatpush1.bf16.msra.mxu0 %v859
        %915 = vmatprep.subr.bf16.mxu0 0
        %916 = vmatpush1.bf16.msra.mxu0 0
        %917 = vmatprep.subr.bf16.mxu0 0
        %918 = vmatpush1.bf16.msra.mxu0 0
        %919 = vmatprep.subr.bf16.mxu0 0
        %920 = vmatpush1.bf16.msra.mxu0 0
        %921 = vmatprep.subr.bf16.mxu0 0
        %922 = vmatpush1.bf16.msra.mxu0 0
        %923 = vmatprep.subr.bf16.mxu0 0
        %924 = vmatpush1.bf16.msra.mxu0 0
        %925 = vmatprep.subr.bf16.mxu0 0
        %926 = vmatpush1.bf16.msra.mxu0 0
        %927 = vmatprep.subr.bf16.mxu0 0
        %928 = vmatpush1.bf16.msra.mxu0 0
        %929 = vmatprep.subr.bf16.mxu0 0
        %930 = vmatpush1.bf16.msra.mxu0 0
        %931 = vmatprep.subr.bf16.mxu0 0
        %932 = vmatpush1.bf16.msra.mxu0 0
        %933 = vmatprep.subr.bf16.mxu0 0
        %934 = vmatpush1.bf16.msra.mxu0 0
        %935 = vmatprep.subr.bf16.mxu0 0
        %936 = vmatpush1.bf16.msra.mxu0 0
        %937 = vmatprep.mubr.bf16.mxu0 0
        %938 = vmatmul.mubr.bf16.gmra.mrb[0].mxu0 %v846
        %v939 = vpop.f32.mrb[0].mxu0
        %v940 = vadd.f32 %v746, %v939
        %v941 = vpop.f32.mrb[0].mxu0
        %v942 = vadd.f32 %v746, %v941
        %v943 = vpop.f32.mrb[0].mxu0
        %v944 = vpop.f32.mrb[0].mxu0
        %945 = vdwg.mxu0
        %v946 = vmax.f32 %v899, 0.0
        %v947 = vmax.f32 %v901, 0.0
        %v948 = vmax.f32 %v940, 0.0
        %v949 = vmax.f32 %v942, 0.0
        %950 = vst [vmem:[%s709] sm:$0x3f] %v946
        %951 = vst [vmem:[%s709 + $0x8] sm:$0x3f] %v947
        %952 = vst [vmem:[%s709 + $0x10] sm:$0x3f] %v948
        %953 = vst [vmem:[%s709 + $0x18] sm:$0x3f] %v949
        %s954 = sand.u32 %s90, 1
        %s955 = sand.u32 %s90, 1
        %s956 = smul.addr %s955, 32
        %s957 = scalar_lea.vmem [#allocation3], %s956
        // Predicated region
        $region99: #{net_forward.5} parent=93 // pred_check
          %p958 = pneg %p100
        $region100: #{net_forward.5} parent=93 // pred_check_branch
          %960 = sbr.rel (%p958) target = $region102
        $region101: #{net_forward.5} parent=93 // pred_region
          %s961 = smul.u32 4, %s14
          %s962 = ssub.s32 13, %s961
          %p963 = scmp.lt.s32.totalorder %s962, 4
          %s964 = scalar_select %p963, %s962, 4
          %s965 = smul.u32 128, %s964
          %p966 = scmp.ne.s32.totalorder 0, %s965
          %s967 = smul.addr %s961, 8
          %s968 = scalar_lea.vmem %s3, %s967
          %s969 = smul.u32 %s964, 8
          // Predicated region
          $region103: #{net_forward.5} parent=101 // pred_check
            %p970 = pneg %p966
          $region104: #{net_forward.5} parent=101 // pred_check_branch
            %972 = sbr.rel (%p970) target = $region106
          $region105: #{net_forward.5} parent=101 // pred_region
            %p973 = scmp.lt.u32.totalorder %s969, 8
            %p974 = pneg %p973
            // Predicated region
            $region107: #{net_forward.5} parent=105 // pred_check
              _
            $region108: #{net_forward.5} parent=105 // pred_check_branch
              %976 = sbr.rel (%p973) target = $region110
            $region109: #{net_forward.5} parent=105 // pred_region
              %s991 = sand.u32 %s969, 7
              %p992 = scmp.eq.s32.totalorder %s991, 0
              // Predicated region
              $region122: #{net_forward.5} parent=109 // pred_check
                %p993 = pneg %p992
              $region123: #{net_forward.5} parent=109 // pred_check_branch
                %995 = sbr.rel (%p993) target = $region125
              $region124: #{net_forward.5} parent=109 // pred_region
                %s996 = sshrl.u32 %s969, 3
                %s997 = sshrl.u32 %s996, 6
                // While loop
                $region126: #{net_forward.5} parent=124 // loop_pre_header
                  _
                $region127: #{net_forward.5} parent=124 // loop_header
                  %s1001 = sphi 0, %s1003
                  %p1002 = scmp.ge.s32.totalorder %s1001, %s997
                  %s1006 = sphi 0, %s1139
                  %s1007 = sphi %s957, %s1142
                  %s1008 = sphi %s968, %s1143
                $region128: #{net_forward.5} parent=124 // loop_header_branch
                  %1005 = sbr.rel (%p1002) target = $region132
                $region129: #{net_forward.5} parent=124 // loop_body
                  %v1009 = vld [vmem:[%s1007] sm:$0xff]
                  %1010 = vst [vmem:[%s1008] sm:$0xff] %v1009
                  %v1011 = vld [vmem:[%s1007 + $0x8] sm:$0xff]
                  %1012 = vst [vmem:[%s1008 + $0x8] sm:$0xff] %v1011
                  %v1013 = vld [vmem:[%s1007 + $0x10] sm:$0xff]
                  %1014 = vst [vmem:[%s1008 + $0x10] sm:$0xff] %v1013
                  %v1015 = vld [vmem:[%s1007 + $0x18] sm:$0xff]
                  %1016 = vst [vmem:[%s1008 + $0x18] sm:$0xff] %v1015
                  %v1017 = vld [vmem:[%s1007 + $0x20] sm:$0xff]
                  %1018 = vst [vmem:[%s1008 + $0x20] sm:$0xff] %v1017
                  %v1019 = vld [vmem:[%s1007 + $0x28] sm:$0xff]
                  %1020 = vst [vmem:[%s1008 + $0x28] sm:$0xff] %v1019
                  %v1021 = vld [vmem:[%s1007 + $0x30] sm:$0xff]
                  %1022 = vst [vmem:[%s1008 + $0x30] sm:$0xff] %v1021
                  %v1023 = vld [vmem:[%s1007 + $0x38] sm:$0xff]
                  %1024 = vst [vmem:[%s1008 + $0x38] sm:$0xff] %v1023
                  %v1025 = vld [vmem:[%s1007 + $0x40] sm:$0xff]
                  %1026 = vst [vmem:[%s1008 + $0x40] sm:$0xff] %v1025
                  %v1027 = vld [vmem:[%s1007 + $0x48] sm:$0xff]
                  %1028 = vst [vmem:[%s1008 + $0x48] sm:$0xff] %v1027
                  %v1029 = vld [vmem:[%s1007 + $0x50] sm:$0xff]
                  %1030 = vst [vmem:[%s1008 + $0x50] sm:$0xff] %v1029
                  %v1031 = vld [vmem:[%s1007 + $0x58] sm:$0xff]
                  %1032 = vst [vmem:[%s1008 + $0x58] sm:$0xff] %v1031
                  %v1033 = vld [vmem:[%s1007 + $0x60] sm:$0xff]
                  %1034 = vst [vmem:[%s1008 + $0x60] sm:$0xff] %v1033
                  %v1035 = vld [vmem:[%s1007 + $0x68] sm:$0xff]
                  %1036 = vst [vmem:[%s1008 + $0x68] sm:$0xff] %v1035
                  %v1037 = vld [vmem:[%s1007 + $0x70] sm:$0xff]
                  %1038 = vst [vmem:[%s1008 + $0x70] sm:$0xff] %v1037
                  %v1039 = vld [vmem:[%s1007 + $0x78] sm:$0xff]
                  %1040 = vst [vmem:[%s1008 + $0x78] sm:$0xff] %v1039
                  %v1041 = vld [vmem:[%s1007 + $0x80] sm:$0xff]
                  %1042 = vst [vmem:[%s1008 + $0x80] sm:$0xff] %v1041
                  %v1043 = vld [vmem:[%s1007 + $0x88] sm:$0xff]
                  %1044 = vst [vmem:[%s1008 + $0x88] sm:$0xff] %v1043
                  %v1045 = vld [vmem:[%s1007 + $0x90] sm:$0xff]
                  %1046 = vst [vmem:[%s1008 + $0x90] sm:$0xff] %v1045
                  %v1047 = vld [vmem:[%s1007 + $0x98] sm:$0xff]
                  %1048 = vst [vmem:[%s1008 + $0x98] sm:$0xff] %v1047
                  %v1049 = vld [vmem:[%s1007 + $0xa0] sm:$0xff]
                  %1050 = vst [vmem:[%s1008 + $0xa0] sm:$0xff] %v1049
                  %v1051 = vld [vmem:[%s1007 + $0xa8] sm:$0xff]
                  %1052 = vst [vmem:[%s1008 + $0xa8] sm:$0xff] %v1051
                  %v1053 = vld [vmem:[%s1007 + $0xb0] sm:$0xff]
                  %1054 = vst [vmem:[%s1008 + $0xb0] sm:$0xff] %v1053
                  %v1055 = vld [vmem:[%s1007 + $0xb8] sm:$0xff]
                  %1056 = vst [vmem:[%s1008 + $0xb8] sm:$0xff] %v1055
                  %v1057 = vld [vmem:[%s1007 + $0xc0] sm:$0xff]
                  %1058 = vst [vmem:[%s1008 + $0xc0] sm:$0xff] %v1057
                  %v1059 = vld [vmem:[%s1007 + $0xc8] sm:$0xff]
                  %1060 = vst [vmem:[%s1008 + $0xc8] sm:$0xff] %v1059
                  %v1061 = vld [vmem:[%s1007 + $0xd0] sm:$0xff]
                  %1062 = vst [vmem:[%s1008 + $0xd0] sm:$0xff] %v1061
                  %v1063 = vld [vmem:[%s1007 + $0xd8] sm:$0xff]
                  %1064 = vst [vmem:[%s1008 + $0xd8] sm:$0xff] %v1063
                  %v1065 = vld [vmem:[%s1007 + $0xe0] sm:$0xff]
                  %1066 = vst [vmem:[%s1008 + $0xe0] sm:$0xff] %v1065
                  %v1067 = vld [vmem:[%s1007 + $0xe8] sm:$0xff]
                  %1068 = vst [vmem:[%s1008 + $0xe8] sm:$0xff] %v1067
                  %v1069 = vld [vmem:[%s1007 + $0xf0] sm:$0xff]
                  %1070 = vst [vmem:[%s1008 + $0xf0] sm:$0xff] %v1069
                  %v1071 = vld [vmem:[%s1007 + $0xf8] sm:$0xff]
                  %1072 = vst [vmem:[%s1008 + $0xf8] sm:$0xff] %v1071
                  %v1073 = vld [vmem:[%s1007 + $0x100] sm:$0xff]
                  %1074 = vst [vmem:[%s1008 + $0x100] sm:$0xff] %v1073
                  %v1075 = vld [vmem:[%s1007 + $0x108] sm:$0xff]
                  %1076 = vst [vmem:[%s1008 + $0x108] sm:$0xff] %v1075
                  %v1077 = vld [vmem:[%s1007 + $0x110] sm:$0xff]
                  %1078 = vst [vmem:[%s1008 + $0x110] sm:$0xff] %v1077
                  %v1079 = vld [vmem:[%s1007 + $0x118] sm:$0xff]
                  %1080 = vst [vmem:[%s1008 + $0x118] sm:$0xff] %v1079
                  %v1081 = vld [vmem:[%s1007 + $0x120] sm:$0xff]
                  %1082 = vst [vmem:[%s1008 + $0x120] sm:$0xff] %v1081
                  %v1083 = vld [vmem:[%s1007 + $0x128] sm:$0xff]
                  %1084 = vst [vmem:[%s1008 + $0x128] sm:$0xff] %v1083
                  %v1085 = vld [vmem:[%s1007 + $0x130] sm:$0xff]
                  %1086 = vst [vmem:[%s1008 + $0x130] sm:$0xff] %v1085
                  %v1087 = vld [vmem:[%s1007 + $0x138] sm:$0xff]
                  %1088 = vst [vmem:[%s1008 + $0x138] sm:$0xff] %v1087
                  %v1089 = vld [vmem:[%s1007 + $0x140] sm:$0xff]
                  %1090 = vst [vmem:[%s1008 + $0x140] sm:$0xff] %v1089
                  %v1091 = vld [vmem:[%s1007 + $0x148] sm:$0xff]
                  %1092 = vst [vmem:[%s1008 + $0x148] sm:$0xff] %v1091
                  %v1093 = vld [vmem:[%s1007 + $0x150] sm:$0xff]
                  %1094 = vst [vmem:[%s1008 + $0x150] sm:$0xff] %v1093
                  %v1095 = vld [vmem:[%s1007 + $0x158] sm:$0xff]
                  %1096 = vst [vmem:[%s1008 + $0x158] sm:$0xff] %v1095
                  %v1097 = vld [vmem:[%s1007 + $0x160] sm:$0xff]
                  %1098 = vst [vmem:[%s1008 + $0x160] sm:$0xff] %v1097
                  %v1099 = vld [vmem:[%s1007 + $0x168] sm:$0xff]
                  %1100 = vst [vmem:[%s1008 + $0x168] sm:$0xff] %v1099
                  %v1101 = vld [vmem:[%s1007 + $0x170] sm:$0xff]
                  %1102 = vst [vmem:[%s1008 + $0x170] sm:$0xff] %v1101
                  %v1103 = vld [vmem:[%s1007 + $0x178] sm:$0xff]
                  %1104 = vst [vmem:[%s1008 + $0x178] sm:$0xff] %v1103
                  %v1105 = vld [vmem:[%s1007 + $0x180] sm:$0xff]
                  %1106 = vst [vmem:[%s1008 + $0x180] sm:$0xff] %v1105
                  %v1107 = vld [vmem:[%s1007 + $0x188] sm:$0xff]
                  %1108 = vst [vmem:[%s1008 + $0x188] sm:$0xff] %v1107
                  %v1109 = vld [vmem:[%s1007 + $0x190] sm:$0xff]
                  %1110 = vst [vmem:[%s1008 + $0x190] sm:$0xff] %v1109
                  %v1111 = vld [vmem:[%s1007 + $0x198] sm:$0xff]
                  %1112 = vst [vmem:[%s1008 + $0x198] sm:$0xff] %v1111
                  %v1113 = vld [vmem:[%s1007 + $0x1a0] sm:$0xff]
                  %1114 = vst [vmem:[%s1008 + $0x1a0] sm:$0xff] %v1113
                  %v1115 = vld [vmem:[%s1007 + $0x1a8] sm:$0xff]
                  %1116 = vst [vmem:[%s1008 + $0x1a8] sm:$0xff] %v1115
                  %v1117 = vld [vmem:[%s1007 + $0x1b0] sm:$0xff]
                  %1118 = vst [vmem:[%s1008 + $0x1b0] sm:$0xff] %v1117
                  %v1119 = vld [vmem:[%s1007 + $0x1b8] sm:$0xff]
                  %1120 = vst [vmem:[%s1008 + $0x1b8] sm:$0xff] %v1119
                  %v1121 = vld [vmem:[%s1007 + $0x1c0] sm:$0xff]
                  %1122 = vst [vmem:[%s1008 + $0x1c0] sm:$0xff] %v1121
                  %v1123 = vld [vmem:[%s1007 + $0x1c8] sm:$0xff]
                  %1124 = vst [vmem:[%s1008 + $0x1c8] sm:$0xff] %v1123
                  %v1125 = vld [vmem:[%s1007 + $0x1d0] sm:$0xff]
                  %1126 = vst [vmem:[%s1008 + $0x1d0] sm:$0xff] %v1125
                  %v1127 = vld [vmem:[%s1007 + $0x1d8] sm:$0xff]
                  %1128 = vst [vmem:[%s1008 + $0x1d8] sm:$0xff] %v1127
                  %v1129 = vld [vmem:[%s1007 + $0x1e0] sm:$0xff]
                  %1130 = vst [vmem:[%s1008 + $0x1e0] sm:$0xff] %v1129
                  %v1131 = vld [vmem:[%s1007 + $0x1e8] sm:$0xff]
                  %1132 = vst [vmem:[%s1008 + $0x1e8] sm:$0xff] %v1131
                  %v1133 = vld [vmem:[%s1007 + $0x1f0] sm:$0xff]
                  %1134 = vst [vmem:[%s1008 + $0x1f0] sm:$0xff] %v1133
                  %v1135 = vld [vmem:[%s1007 + $0x1f8] sm:$0xff]
                  %1136 = vst [vmem:[%s1008 + $0x1f8] sm:$0xff] %v1135
                  %s1137 = sadd.s32 1, %s1006
                  %p1138 = scmp.ge.s32.totalorder %s1137, %s997
                  %s1139 = scalar_select %p1138, 0, %s1137
                  %s1140 = smul.u32 %s1139, 512
                  %s1141 = smul.u32 %s1139, 512
                  %s1142 = scalar_lea.vmem %s957, %s1140 [#allocation3]
                  %s1143 = scalar_lea.vmem %s968, %s1141
                $region130: #{net_forward.5} parent=124 // loop_footer
                  %s1003 = sadd.s32 %s1001, 1
                $region131: #{net_forward.5} parent=124 // loop_footer_branch
                  %1000 = sbr.rel target = $region127
                $region132: #{net_forward.5} parent=124 // loop_exit
                  _
                %s1144 = sshrl.u32 %s996, 6
                %s1145 = sand.u32 %s996, 63
                %s1146 = smul.u32 %s1144, 64
                %s1147 = smul.u32 128, %s1146
                %s1148 = sshra.s32 %s1147, 4
                %s1149 = scalar_lea.vmem %s957, %s1148 [#allocation3]
                %s1150 = smul.u32 128, %s1146
                %s1151 = sshra.s32 %s1150, 4
                %s1152 = scalar_lea.vmem %s968, %s1151
                // While loop
                $region133: #{net_forward.5} parent=124 // loop_pre_header
                  _
                $region134: #{net_forward.5} parent=124 // loop_header
                  %s1156 = sphi 0, %s1158
                  %p1157 = scmp.ge.s32.totalorder %s1156, %s1145
                  %s1161 = sphi 0, %s1168
                  %s1162 = sphi %s1149, %s1171
                  %s1163 = sphi %s1152, %s1172
                $region135: #{net_forward.5} parent=124 // loop_header_branch
                  %1160 = sbr.rel (%p1157) target = $region139
                $region136: #{net_forward.5} parent=124 // loop_body
                  %v1164 = vld [vmem:[%s1162] sm:$0xff]
                  %1165 = vst [vmem:[%s1163] sm:$0xff] %v1164
                  %s1166 = sadd.s32 1, %s1161
                  %p1167 = scmp.ge.s32.totalorder %s1166, %s1145
                  %s1168 = scalar_select %p1167, 0, %s1166
                  %s1169 = smul.u32 %s1168, 8
                  %s1170 = smul.u32 %s1168, 8
                  %s1171 = scalar_lea.vmem %s1149, %s1169 [#allocation3]
                  %s1172 = scalar_lea.vmem %s1152, %s1170
                $region137: #{net_forward.5} parent=124 // loop_footer
                  %s1158 = sadd.s32 %s1156, 1
                $region138: #{net_forward.5} parent=124 // loop_footer_branch
                  %1155 = sbr.rel target = $region134
                $region139: #{net_forward.5} parent=124 // loop_exit
                  _
              $region125: #{net_forward.5} parent=109 // pred_fallthru
                _
              %p1173 = pneg %p992
              // Predicated region
              $region140: #{net_forward.5} parent=109 // pred_check
                _
              $region141: #{net_forward.5} parent=109 // pred_check_branch
                %1175 = sbr.rel (%p992) target = $region143
              $region142: #{net_forward.5} parent=109 // pred_region
                %s1176 = sand.u32 %s969, 7
                %s1177 = ssub.s32 %s969, %s1176
                %s1178 = scalar_lea.vmem %s957, %s1177 [#allocation3]
                %s1179 = ssub.s32 %s969, %s1176
                %s1180 = scalar_lea.vmem %s968, %s1179
                %s1181 = sshrl.u32 %s969, 3
                %s1182 = sshrl.u32 %s1181, 6
                // While loop
                $region144: #{net_forward.5} parent=142 // loop_pre_header
                  _
                $region145: #{net_forward.5} parent=142 // loop_header
                  %s1186 = sphi 0, %s1188
                  %p1187 = scmp.ge.s32.totalorder %s1186, %s1182
                  %s1191 = sphi 0, %s1324
                  %s1192 = sphi %s957, %s1327
                  %s1193 = sphi %s968, %s1328
                $region146: #{net_forward.5} parent=142 // loop_header_branch
                  %1190 = sbr.rel (%p1187) target = $region150
                $region147: #{net_forward.5} parent=142 // loop_body
                  %v1194 = vld [vmem:[%s1192] sm:$0xff]
                  %1195 = vst [vmem:[%s1193] sm:$0xff] %v1194
                  %v1196 = vld [vmem:[%s1192 + $0x8] sm:$0xff]
                  %1197 = vst [vmem:[%s1193 + $0x8] sm:$0xff] %v1196
                  %v1198 = vld [vmem:[%s1192 + $0x10] sm:$0xff]
                  %1199 = vst [vmem:[%s1193 + $0x10] sm:$0xff] %v1198
                  %v1200 = vld [vmem:[%s1192 + $0x18] sm:$0xff]
                  %1201 = vst [vmem:[%s1193 + $0x18] sm:$0xff] %v1200
                  %v1202 = vld [vmem:[%s1192 + $0x20] sm:$0xff]
                  %1203 = vst [vmem:[%s1193 + $0x20] sm:$0xff] %v1202
                  %v1204 = vld [vmem:[%s1192 + $0x28] sm:$0xff]
                  %1205 = vst [vmem:[%s1193 + $0x28] sm:$0xff] %v1204
                  %v1206 = vld [vmem:[%s1192 + $0x30] sm:$0xff]
                  %1207 = vst [vmem:[%s1193 + $0x30] sm:$0xff] %v1206
                  %v1208 = vld [vmem:[%s1192 + $0x38] sm:$0xff]
                  %1209 = vst [vmem:[%s1193 + $0x38] sm:$0xff] %v1208
                  %v1210 = vld [vmem:[%s1192 + $0x40] sm:$0xff]
                  %1211 = vst [vmem:[%s1193 + $0x40] sm:$0xff] %v1210
                  %v1212 = vld [vmem:[%s1192 + $0x48] sm:$0xff]
                  %1213 = vst [vmem:[%s1193 + $0x48] sm:$0xff] %v1212
                  %v1214 = vld [vmem:[%s1192 + $0x50] sm:$0xff]
                  %1215 = vst [vmem:[%s1193 + $0x50] sm:$0xff] %v1214
                  %v1216 = vld [vmem:[%s1192 + $0x58] sm:$0xff]
                  %1217 = vst [vmem:[%s1193 + $0x58] sm:$0xff] %v1216
                  %v1218 = vld [vmem:[%s1192 + $0x60] sm:$0xff]
                  %1219 = vst [vmem:[%s1193 + $0x60] sm:$0xff] %v1218
                  %v1220 = vld [vmem:[%s1192 + $0x68] sm:$0xff]
                  %1221 = vst [vmem:[%s1193 + $0x68] sm:$0xff] %v1220
                  %v1222 = vld [vmem:[%s1192 + $0x70] sm:$0xff]
                  %1223 = vst [vmem:[%s1193 + $0x70] sm:$0xff] %v1222
                  %v1224 = vld [vmem:[%s1192 + $0x78] sm:$0xff]
                  %1225 = vst [vmem:[%s1193 + $0x78] sm:$0xff] %v1224
                  %v1226 = vld [vmem:[%s1192 + $0x80] sm:$0xff]
                  %1227 = vst [vmem:[%s1193 + $0x80] sm:$0xff] %v1226
                  %v1228 = vld [vmem:[%s1192 + $0x88] sm:$0xff]
                  %1229 = vst [vmem:[%s1193 + $0x88] sm:$0xff] %v1228
                  %v1230 = vld [vmem:[%s1192 + $0x90] sm:$0xff]
                  %1231 = vst [vmem:[%s1193 + $0x90] sm:$0xff] %v1230
                  %v1232 = vld [vmem:[%s1192 + $0x98] sm:$0xff]
                  %1233 = vst [vmem:[%s1193 + $0x98] sm:$0xff] %v1232
                  %v1234 = vld [vmem:[%s1192 + $0xa0] sm:$0xff]
                  %1235 = vst [vmem:[%s1193 + $0xa0] sm:$0xff] %v1234
                  %v1236 = vld [vmem:[%s1192 + $0xa8] sm:$0xff]
                  %1237 = vst [vmem:[%s1193 + $0xa8] sm:$0xff] %v1236
                  %v1238 = vld [vmem:[%s1192 + $0xb0] sm:$0xff]
                  %1239 = vst [vmem:[%s1193 + $0xb0] sm:$0xff] %v1238
                  %v1240 = vld [vmem:[%s1192 + $0xb8] sm:$0xff]
                  %1241 = vst [vmem:[%s1193 + $0xb8] sm:$0xff] %v1240
                  %v1242 = vld [vmem:[%s1192 + $0xc0] sm:$0xff]
                  %1243 = vst [vmem:[%s1193 + $0xc0] sm:$0xff] %v1242
                  %v1244 = vld [vmem:[%s1192 + $0xc8] sm:$0xff]
                  %1245 = vst [vmem:[%s1193 + $0xc8] sm:$0xff] %v1244
                  %v1246 = vld [vmem:[%s1192 + $0xd0] sm:$0xff]
                  %1247 = vst [vmem:[%s1193 + $0xd0] sm:$0xff] %v1246
                  %v1248 = vld [vmem:[%s1192 + $0xd8] sm:$0xff]
                  %1249 = vst [vmem:[%s1193 + $0xd8] sm:$0xff] %v1248
                  %v1250 = vld [vmem:[%s1192 + $0xe0] sm:$0xff]
                  %1251 = vst [vmem:[%s1193 + $0xe0] sm:$0xff] %v1250
                  %v1252 = vld [vmem:[%s1192 + $0xe8] sm:$0xff]
                  %1253 = vst [vmem:[%s1193 + $0xe8] sm:$0xff] %v1252
                  %v1254 = vld [vmem:[%s1192 + $0xf0] sm:$0xff]
                  %1255 = vst [vmem:[%s1193 + $0xf0] sm:$0xff] %v1254
                  %v1256 = vld [vmem:[%s1192 + $0xf8] sm:$0xff]
                  %1257 = vst [vmem:[%s1193 + $0xf8] sm:$0xff] %v1256
                  %v1258 = vld [vmem:[%s1192 + $0x100] sm:$0xff]
                  %1259 = vst [vmem:[%s1193 + $0x100] sm:$0xff] %v1258
                  %v1260 = vld [vmem:[%s1192 + $0x108] sm:$0xff]
                  %1261 = vst [vmem:[%s1193 + $0x108] sm:$0xff] %v1260
                  %v1262 = vld [vmem:[%s1192 + $0x110] sm:$0xff]
                  %1263 = vst [vmem:[%s1193 + $0x110] sm:$0xff] %v1262
                  %v1264 = vld [vmem:[%s1192 + $0x118] sm:$0xff]
                  %1265 = vst [vmem:[%s1193 + $0x118] sm:$0xff] %v1264
                  %v1266 = vld [vmem:[%s1192 + $0x120] sm:$0xff]
                  %1267 = vst [vmem:[%s1193 + $0x120] sm:$0xff] %v1266
                  %v1268 = vld [vmem:[%s1192 + $0x128] sm:$0xff]
                  %1269 = vst [vmem:[%s1193 + $0x128] sm:$0xff] %v1268
                  %v1270 = vld [vmem:[%s1192 + $0x130] sm:$0xff]
                  %1271 = vst [vmem:[%s1193 + $0x130] sm:$0xff] %v1270
                  %v1272 = vld [vmem:[%s1192 + $0x138] sm:$0xff]
                  %1273 = vst [vmem:[%s1193 + $0x138] sm:$0xff] %v1272
                  %v1274 = vld [vmem:[%s1192 + $0x140] sm:$0xff]
                  %1275 = vst [vmem:[%s1193 + $0x140] sm:$0xff] %v1274
                  %v1276 = vld [vmem:[%s1192 + $0x148] sm:$0xff]
                  %1277 = vst [vmem:[%s1193 + $0x148] sm:$0xff] %v1276
                  %v1278 = vld [vmem:[%s1192 + $0x150] sm:$0xff]
                  %1279 = vst [vmem:[%s1193 + $0x150] sm:$0xff] %v1278
                  %v1280 = vld [vmem:[%s1192 + $0x158] sm:$0xff]
                  %1281 = vst [vmem:[%s1193 + $0x158] sm:$0xff] %v1280
                  %v1282 = vld [vmem:[%s1192 + $0x160] sm:$0xff]
                  %1283 = vst [vmem:[%s1193 + $0x160] sm:$0xff] %v1282
                  %v1284 = vld [vmem:[%s1192 + $0x168] sm:$0xff]
                  %1285 = vst [vmem:[%s1193 + $0x168] sm:$0xff] %v1284
                  %v1286 = vld [vmem:[%s1192 + $0x170] sm:$0xff]
                  %1287 = vst [vmem:[%s1193 + $0x170] sm:$0xff] %v1286
                  %v1288 = vld [vmem:[%s1192 + $0x178] sm:$0xff]
                  %1289 = vst [vmem:[%s1193 + $0x178] sm:$0xff] %v1288
                  %v1290 = vld [vmem:[%s1192 + $0x180] sm:$0xff]
                  %1291 = vst [vmem:[%s1193 + $0x180] sm:$0xff] %v1290
                  %v1292 = vld [vmem:[%s1192 + $0x188] sm:$0xff]
                  %1293 = vst [vmem:[%s1193 + $0x188] sm:$0xff] %v1292
                  %v1294 = vld [vmem:[%s1192 + $0x190] sm:$0xff]
                  %1295 = vst [vmem:[%s1193 + $0x190] sm:$0xff] %v1294
                  %v1296 = vld [vmem:[%s1192 + $0x198] sm:$0xff]
                  %1297 = vst [vmem:[%s1193 + $0x198] sm:$0xff] %v1296
                  %v1298 = vld [vmem:[%s1192 + $0x1a0] sm:$0xff]
                  %1299 = vst [vmem:[%s1193 + $0x1a0] sm:$0xff] %v1298
                  %v1300 = vld [vmem:[%s1192 + $0x1a8] sm:$0xff]
                  %1301 = vst [vmem:[%s1193 + $0x1a8] sm:$0xff] %v1300
                  %v1302 = vld [vmem:[%s1192 + $0x1b0] sm:$0xff]
                  %1303 = vst [vmem:[%s1193 + $0x1b0] sm:$0xff] %v1302
                  %v1304 = vld [vmem:[%s1192 + $0x1b8] sm:$0xff]
                  %1305 = vst [vmem:[%s1193 + $0x1b8] sm:$0xff] %v1304
                  %v1306 = vld [vmem:[%s1192 + $0x1c0] sm:$0xff]
                  %1307 = vst [vmem:[%s1193 + $0x1c0] sm:$0xff] %v1306
                  %v1308 = vld [vmem:[%s1192 + $0x1c8] sm:$0xff]
                  %1309 = vst [vmem:[%s1193 + $0x1c8] sm:$0xff] %v1308
                  %v1310 = vld [vmem:[%s1192 + $0x1d0] sm:$0xff]
                  %1311 = vst [vmem:[%s1193 + $0x1d0] sm:$0xff] %v1310
                  %v1312 = vld [vmem:[%s1192 + $0x1d8] sm:$0xff]
                  %1313 = vst [vmem:[%s1193 + $0x1d8] sm:$0xff] %v1312
                  %v1314 = vld [vmem:[%s1192 + $0x1e0] sm:$0xff]
                  %1315 = vst [vmem:[%s1193 + $0x1e0] sm:$0xff] %v1314
                  %v1316 = vld [vmem:[%s1192 + $0x1e8] sm:$0xff]
                  %1317 = vst [vmem:[%s1193 + $0x1e8] sm:$0xff] %v1316
                  %v1318 = vld [vmem:[%s1192 + $0x1f0] sm:$0xff]
                  %1319 = vst [vmem:[%s1193 + $0x1f0] sm:$0xff] %v1318
                  %v1320 = vld [vmem:[%s1192 + $0x1f8] sm:$0xff]
                  %1321 = vst [vmem:[%s1193 + $0x1f8] sm:$0xff] %v1320
                  %s1322 = sadd.s32 1, %s1191
                  %p1323 = scmp.ge.s32.totalorder %s1322, %s1182
                  %s1324 = scalar_select %p1323, 0, %s1322
                  %s1325 = smul.u32 %s1324, 512
                  %s1326 = smul.u32 %s1324, 512
                  %s1327 = scalar_lea.vmem %s957, %s1325 [#allocation3]
                  %s1328 = scalar_lea.vmem %s968, %s1326
                $region148: #{net_forward.5} parent=142 // loop_footer
                  %s1188 = sadd.s32 %s1186, 1
                $region149: #{net_forward.5} parent=142 // loop_footer_branch
                  %1185 = sbr.rel target = $region145
                $region150: #{net_forward.5} parent=142 // loop_exit
                  _
                %s1329 = sshrl.u32 %s1181, 6
                %s1330 = sand.u32 %s1181, 63
                %s1331 = smul.u32 %s1329, 64
                %s1332 = smul.u32 128, %s1331
                %s1333 = sshra.s32 %s1332, 4
                %s1334 = scalar_lea.vmem %s957, %s1333 [#allocation3]
                %s1335 = smul.u32 128, %s1331
                %s1336 = sshra.s32 %s1335, 4
                %s1337 = scalar_lea.vmem %s968, %s1336
                // While loop
                $region151: #{net_forward.5} parent=142 // loop_pre_header
                  _
                $region152: #{net_forward.5} parent=142 // loop_header
                  %s1341 = sphi 0, %s1343
                  %p1342 = scmp.ge.s32.totalorder %s1341, %s1330
                  %s1346 = sphi 0, %s1353
                  %s1347 = sphi %s1334, %s1356
                  %s1348 = sphi %s1337, %s1357
                $region153: #{net_forward.5} parent=142 // loop_header_branch
                  %1345 = sbr.rel (%p1342) target = $region157
                $region154: #{net_forward.5} parent=142 // loop_body
                  %v1349 = vld [vmem:[%s1347] sm:$0xff]
                  %1350 = vst [vmem:[%s1348] sm:$0xff] %v1349
                  %s1351 = sadd.s32 1, %s1346
                  %p1352 = scmp.ge.s32.totalorder %s1351, %s1330
                  %s1353 = scalar_select %p1352, 0, %s1351
                  %s1354 = smul.u32 %s1353, 8
                  %s1355 = smul.u32 %s1353, 8
                  %s1356 = scalar_lea.vmem %s1334, %s1354 [#allocation3]
                  %s1357 = scalar_lea.vmem %s1337, %s1355
                $region155: #{net_forward.5} parent=142 // loop_footer
                  %s1343 = sadd.s32 %s1341, 1
                $region156: #{net_forward.5} parent=142 // loop_footer_branch
                  %1340 = sbr.rel target = $region152
                $region157: #{net_forward.5} parent=142 // loop_exit
                  _
                %s1358 = sshllo.u32 0, %s1176
                loop: start=0, step=1, limit=1
                $region158: #{net_forward.5} parent=142 // loop_pre_header
                  _
                $region159: #{net_forward.5} parent=142 // loop_header
                  %s1360 = sphi 0, %s1364
                  %p1361 = scmp.ge.s32.totalorder %s1360, 1
                  %s1365 = sphi %s1178, %s1178
                  %s1366 = sphi %s1180, %s1180
                $region160: #{net_forward.5} parent=142 // loop_header_branch
                  %1363 = sbr.rel (%p1361) target = $region164
                $region161: #{net_forward.5} parent=142 // loop_body
                  %v1367 = vld [vmem:[%s1365] sm:%s1358]
                  %1368 = vst [vmem:[%s1366] sm:%s1358] %v1367
                $region162: #{net_forward.5} parent=142 // loop_footer
                  %s1364 = sadd.s32 1, %s1360
                $region163: #{net_forward.5} parent=142 // loop_footer_branch
                  %1359 = sbr.rel target = $region159
                $region164: #{net_forward.5} parent=142 // loop_exit
                  _
              $region143: #{net_forward.5} parent=109 // pred_fallthru
                _
            $region110: #{net_forward.5} parent=105 // pred_fallthru
              _
            // Predicated region
            $region111: #{net_forward.5} parent=105 // pred_check
              %p977 = pneg %p973
            $region112: #{net_forward.5} parent=105 // pred_check_branch
              %979 = sbr.rel (%p977) target = $region114
            $region113: #{net_forward.5} parent=105 // pred_region
              %s980 = sshllo.u32 0, %s969
              loop: start=0, step=1, limit=1
              $region115: #{net_forward.5} parent=113 // loop_pre_header
                _
              $region116: #{net_forward.5} parent=113 // loop_header
                %s982 = sphi 0, %s986
                %p983 = scmp.ge.s32.totalorder %s982, 1
                %s987 = sphi %s957, %s957
                %s988 = sphi %s968, %s968
              $region117: #{net_forward.5} parent=113 // loop_header_branch
                %985 = sbr.rel (%p983) target = $region121
              $region118: #{net_forward.5} parent=113 // loop_body
                %v989 = vld [vmem:[%s987] sm:%s980]
                %990 = vst [vmem:[%s988] sm:%s980] %v989
              $region119: #{net_forward.5} parent=113 // loop_footer
                %s986 = sadd.s32 1, %s982
              $region120: #{net_forward.5} parent=113 // loop_footer_branch
                %981 = sbr.rel target = $region116
              $region121: #{net_forward.5} parent=113 // loop_exit
                _
            $region114: #{net_forward.5} parent=105 // pred_fallthru
              _
          $region106: #{net_forward.5} parent=101 // pred_fallthru
            _
          %1369 = vnop
        $region102: #{net_forward.5} parent=93 // pred_fallthru
          _
      $region94: #{net_forward.5} parent=5 // pred_fallthru
        _
      %p1370 = scmp.le.s32.totalorder 2, %s9
      // Predicated region
      $region165: #{net_forward.5} parent=5 // pred_check
        %p1371 = pneg %p1370
      $region166: #{net_forward.5} parent=5 // pred_check_branch
        %1373 = sbr.rel (%p1371) target = $region168
      $region167: #{net_forward.5} parent=5 // pred_region
        %s1374 = ssub.s32 %s9, 2
        // Predicated region
        $region169: #{net_forward.5} parent=167 // pred_check
          %p1375 = pneg %p106
        $region170: #{net_forward.5} parent=167 // pred_check_branch
          %1377 = sbr.rel (%p1375) target = $region172
        $region171: #{net_forward.5} parent=167 // pred_region
          %s1378 = sand.u32 %s91, 1
          %s1379 = sand.u32 %s91, 1
          %s1380 = smul.addr %s1379, 32
          %s1381 = scalar_lea.vmem [#allocation3], %s1380
        $region172: #{net_forward.5} parent=167 // pred_fallthru
          _
      $region168: #{net_forward.5} parent=5 // pred_fallthru
        _
    $region6: #{net_forward.5} parent=1 // loop_footer
      %s13 = sadd.s32 1, %s9
    $region7: #{net_forward.5} parent=1 // loop_footer_branch
      %8 = sbr.rel target = $region3
    $region8: #{net_forward.5} parent=1 // loop_exit
      _

// kernel: net_forward.6
$region0: #{net_forward.6}
  #allocation0 [shape = 'u32[]', space=smem, size = 0x4, offset = 0x4, fixed_abs, tag = 'smem constant byte address 0x4 - core index']
  #allocation1 [shape = 'u32[144,128]{1,0:T(1,128)}', space=vmem, size = 0x12000, scoped, tag = 'internal scratch']
  %s0 = inlined_call_operand.vmem [shape: f32[6,392], index: 0, kind: input, shape index: {}]
  %s1 = inlined_call_operand.vmem [shape: f32[6,392], index: 1, kind: input, shape index: {}]
  %s2 = inlined_call_operand.vmem [shape: f32[6,392], index: 2, kind: input, shape index: {}]
  %s3 = inlined_call_operand.vmem [shape: f32[6,392], index: 3, kind: input, shape index: {}]
  %s4 = inlined_call_operand.vmem [shape: f32[6,392], index: 4, kind: output, shape index: {}]
  %s5 = sld [smem:[#allocation0]]
  $region26: #{net_forward.6} parent=0
    _
  %s7 = ssub.s32 1, %s5
  %s8 = scalar_select 0, %s7, %s5
  // Predicated region
  $region2: #{net_forward.6} parent=0 // pred_check
    _
  $region3: #{net_forward.6} parent=0 // pred_check_branch
    %10 = sbr.rel (0) target = $region5
  $region4: #{net_forward.6} parent=0 // pred_region
    _
  $region5: #{net_forward.6} parent=0 // pred_fallthru
    _
  // Predicated region
  $region6: #{net_forward.6} parent=0 // pred_check
    _
  $region7: #{net_forward.6} parent=0 // pred_check_branch
    %12 = sbr.rel (0) target = $region9
  $region8: #{net_forward.6} parent=0 // pred_region
    _
  $region9: #{net_forward.6} parent=0 // pred_fallthru
    _
  // Predicated region
  $region10: #{net_forward.6} parent=0 // pred_check
    _
  $region11: #{net_forward.6} parent=0 // pred_check_branch
    %14 = sbr.rel (0) target = $region13
  $region12: #{net_forward.6} parent=0 // pred_region
    _
  $region13: #{net_forward.6} parent=0 // pred_fallthru
    _
  // Predicated region
  $region14: #{net_forward.6} parent=0 // pred_check
    _
  $region15: #{net_forward.6} parent=0 // pred_check_branch
    %16 = sbr.rel (0) target = $region17
  $region16: #{net_forward.6} parent=0 // pred_region
    _
  $region17: #{net_forward.6} parent=0 // pred_fallthru
    _
  %v17 = vld [vmem:[%s0] sm:$0x3f]
  %v18 = vld [vmem:[%s0 + $0x8] sm:$0x3f]
  %v19 = vld [vmem:[%s0 + $0x10] sm:$0x3f]
  %v20 = vld [vmem:[%s0 + $0x18] sm:$0x3f]
  %v21 = vld [vmem:[%s1] sm:$0x3f]
  %v22 = vld [vmem:[%s1 + $0x8] sm:$0x3f]
  %v23 = vld [vmem:[%s1 + $0x10] sm:$0x3f]
  %v24 = vld [vmem:[%s1 + $0x18] sm:$0x3f]
  %v25 = vmax.f32 %v17, %v21
  %v26 = vmax.f32 %v18, %v22
  %v27 = vmax.f32 %v19, %v23
  %v28 = vmax.f32 %v20, %v24
  %v29 = vld [vmem:[%s2] sm:$0x3f]
  %v30 = vld [vmem:[%s2 + $0x8] sm:$0x3f]
  %v31 = vld [vmem:[%s2 + $0x10] sm:$0x3f]
  %v32 = vld [vmem:[%s2 + $0x18] sm:$0x3f]
  %v33 = vld [vmem:[%s3] sm:$0x3f]
  %v34 = vld [vmem:[%s3 + $0x8] sm:$0x3f]
  %v35 = vld [vmem:[%s3 + $0x10] sm:$0x3f]
  %v36 = vld [vmem:[%s3 + $0x18] sm:$0x3f]
  %v37 = vmax.f32 %v29, %v33
  %v38 = vmax.f32 %v30, %v34
  %v39 = vmax.f32 %v31, %v35
  %v40 = vmax.f32 %v32, %v36
  %v41 = vmax.f32 %v25, %v37
  %v42 = vmax.f32 %v26, %v38
  %v43 = vmax.f32 %v27, %v39
  %v44 = vmax.f32 %v28, %v40
  %45 = vst [vmem:[%s4] sm:$0x3f] %v41
  %46 = vst [vmem:[%s4 + $0x8] sm:$0x3f] %v42
  %47 = vst [vmem:[%s4 + $0x10] sm:$0x3f] %v43
  %vm48 = vcmask 62464
  %49 = vst.msk [vmem:[%s4 + $0x18] sm:$0x3f] %vm48, %v44
  // Predicated region
  $region18: #{net_forward.6} parent=0 // pred_check
    _
  $region19: #{net_forward.6} parent=0 // pred_check_branch
    %51 = sbr.rel (0) target = $region21
  $region20: #{net_forward.6} parent=0 // pred_region
    _
  $region21: #{net_forward.6} parent=0 // pred_fallthru
    _
  // Predicated region
  $region22: #{net_forward.6} parent=0 // pred_check
    _
  $region23: #{net_forward.6} parent=0 // pred_check_branch
    %53 = sbr.rel (0) target = $region25
  $region24: #{net_forward.6} parent=0 // pred_region
    _
  $region25: #{net_forward.6} parent=0 // pred_fallthru
    _

// kernel: net_forward.7
$region0: #{net_forward.7}
  #allocation0 [shape = 'u32[]', space=smem, size = 0x4, offset = 0x4, fixed_abs, tag = 'smem constant byte address 0x4 - core index']
  #allocation1 [shape = 'u32[144,128]{1,0:T(1,128)}', space=vmem, size = 0x12000, scoped, tag = 'internal scratch']
  %s0 = inlined_call_operand.vmem [shape: bf16[16,150], index: 0, kind: input, shape index: {}]
  %s1 = inlined_call_operand.vmem [shape: bf16[150,200], index: 1, kind: input, shape index: {}]
  %s2 = inlined_call_operand.vmem [shape: f32[16,1], index: 2, kind: input, shape index: {}]
  %s3 = inlined_call_operand.vmem [shape: f32[16,200], index: 3, kind: output, shape index: {}]
  %s4 = sld [smem:[#allocation0]]
  $region22: #{net_forward.7} parent=0
    _
  %s6 = ssub.s32 1, %s4
  %s7 = scalar_select 0, %s6, %s4
  // Predicated region
  $region2: #{net_forward.7} parent=0 // pred_check
    _
  $region3: #{net_forward.7} parent=0 // pred_check_branch
    %9 = sbr.rel (0) target = $region5
  $region4: #{net_forward.7} parent=0 // pred_region
    _
  $region5: #{net_forward.7} parent=0 // pred_fallthru
    _
  // Predicated region
  $region6: #{net_forward.7} parent=0 // pred_check
    _
  $region7: #{net_forward.7} parent=0 // pred_check_branch
    %11 = sbr.rel (0) target = $region9
  $region8: #{net_forward.7} parent=0 // pred_region
    _
  $region9: #{net_forward.7} parent=0 // pred_fallthru
    _
  // Predicated region
  $region10: #{net_forward.7} parent=0 // pred_check
    _
  $region11: #{net_forward.7} parent=0 // pred_check_branch
    %13 = sbr.rel (0) target = $region13
  $region12: #{net_forward.7} parent=0 // pred_region
    _
  $region13: #{net_forward.7} parent=0 // pred_fallthru
    _
  %v15 = vld [vmem:[%s0] sm:$0xff]
  %v16 = vld [vmem:[%s0 + $0x8] sm:$0xff]
  %v17 = vld [vmem:[%s1] sm:$0xff]
  %v18 = vld [vmem:[%s1 + $0x8] sm:$0xff]
  %v19 = vld [vmem:[%s1 + $0x10] sm:$0xff]
  %v20 = vld [vmem:[%s1 + $0x18] sm:$0xff]
  %v21 = vld [vmem:[%s1 + $0x20] sm:$0xff]
  %v22 = vld [vmem:[%s1 + $0x28] sm:$0xff]
  %v23 = vld [vmem:[%s1 + $0x30] sm:$0xff]
  %v24 = vld [vmem:[%s1 + $0x38] sm:$0xff]
  %v25 = vld [vmem:[%s1 + $0x40] sm:$0xff]
  %v26 = vld [vmem:[%s1 + $0x48] sm:$0xff]
  %v27 = vld [vmem:[%s1 + $0x50] sm:$0xff]
  %v28 = vld [vmem:[%s1 + $0x58] sm:$0xff]
  %v29 = vld [vmem:[%s1 + $0x60] sm:$0xff]
  %v30 = vld [vmem:[%s1 + $0x68] sm:$0xff]
  %v31 = vld [vmem:[%s1 + $0x70] sm:$0xff]
  %v32 = vld [vmem:[%s1 + $0x78] sm:$0xff]
  %v33 = vld [vmem:[%s1 + $0x80] sm:$0xff]
  %v34 = vld [vmem:[%s1 + $0x88] sm:$0xff]
  %v35 = vld [vmem:[%s1 + $0x90] sm:$0x77]
  %v36 = vld [vmem:[%s2] sm:$0xff]
  %v37 = vld [vmem:[%s2 + $0x8] sm:$0xff]
  %39 = vset.pattern.permute.xlu0 0
  %40 = vperm.xlu0 %39, %v36
  %v41 = vpop.permute.xlu0 %40
  %44 = vset.pattern.permute.xlu0 0
  %45 = vperm.xlu0 %44, %v37
  %v46 = vpop.permute.xlu0 %45
  %v50 = vunpack.c.l.b16 %v15
  %v51 = vunpack.c.h.b16 %v15
  %v52 = vunpack.c.l.b16 %v16
  %v53 = vunpack.c.h.b16 %v16
  %v54 = vpack.c.b16 %v52, %v50
  %v55 = vpack.c.b16 %v53, %v51
  %v76 = vunpack.c.l.b16 %v17
  %v77 = vunpack.c.h.b16 %v17
  %v78 = vunpack.c.l.b16 %v18
  %v79 = vunpack.c.h.b16 %v18
  %v80 = vunpack.c.l.b16 %v19
  %v81 = vunpack.c.h.b16 %v19
  %v82 = vunpack.c.l.b16 %v20
  %v83 = vunpack.c.h.b16 %v20
  %v84 = vunpack.c.l.b16 %v21
  %v85 = vunpack.c.h.b16 %v21
  %v86 = vunpack.c.l.b16 %v22
  %v87 = vunpack.c.h.b16 %v22
  %v88 = vunpack.c.l.b16 %v23
  %v89 = vunpack.c.h.b16 %v23
  %v90 = vunpack.c.l.b16 %v24
  %v91 = vunpack.c.h.b16 %v24
  %v92 = vunpack.c.l.b16 %v25
  %v93 = vunpack.c.h.b16 %v25
  %v94 = vunpack.c.l.b16 %v26
  %v95 = vunpack.c.h.b16 %v26
  %v96 = vunpack.c.l.b16 %v27
  %v97 = vunpack.c.h.b16 %v27
  %v98 = vunpack.c.l.b16 %v28
  %v99 = vunpack.c.h.b16 %v28
  %v100 = vunpack.c.l.b16 %v29
  %v101 = vunpack.c.h.b16 %v29
  %v102 = vunpack.c.l.b16 %v30
  %v103 = vunpack.c.h.b16 %v30
  %v104 = vunpack.c.l.b16 %v31
  %v105 = vunpack.c.h.b16 %v31
  %v106 = vunpack.c.l.b16 %v32
  %v107 = vunpack.c.h.b16 %v32
  %v108 = vunpack.c.l.b16 %v33
  %v109 = vunpack.c.h.b16 %v33
  %v110 = vunpack.c.l.b16 %v34
  %v111 = vunpack.c.h.b16 %v34
  %v112 = vunpack.c.l.b16 %v35
  %v113 = vunpack.c.h.b16 %v35
  %v114 = vpack.c.b16 %v78, %v76
  %v115 = vpack.c.b16 %v79, %v77
  %v116 = vpack.c.b16 %v82, %v80
  %v117 = vpack.c.b16 %v83, %v81
  %v118 = vpack.c.b16 %v86, %v84
  %v119 = vpack.c.b16 %v87, %v85
  %v120 = vpack.c.b16 %v90, %v88
  %v121 = vpack.c.b16 %v91, %v89
  %v122 = vpack.c.b16 %v94, %v92
  %v123 = vpack.c.b16 %v95, %v93
  %v124 = vpack.c.b16 %v98, %v96
  %v125 = vpack.c.b16 %v99, %v97
  %v126 = vpack.c.b16 %v102, %v100
  %v127 = vpack.c.b16 %v103, %v101
  %v128 = vpack.c.b16 %v106, %v104
  %v129 = vpack.c.b16 %v107, %v105
  %v130 = vpack.c.b16 %v110, %v108
  %v131 = vpack.c.b16 %v111, %v109
  %v132 = vpack.c.b16 %v112, %v112
  %v133 = vpack.c.b16 %v113, %v113
  %vm152 = vcmask 179200
  %v154 = vsel %vm152, %v55, 0
  %vm156 = vcmask 1042432
  %v158 = vsel %vm156, %v132, 0
  %v161 = vsel %vm156, %v133, 0
  %163 = vmatprep.subr.bf16.mxu0 %v115
  %164 = vmatpush1.bf16.msra.mxu0 %v114
  %165 = vmatprep.subr.bf16.mxu0 %v117
  %166 = vmatpush1.bf16.msra.mxu0 %v116
  %167 = vmatprep.subr.bf16.mxu0 %v119
  %168 = vmatpush1.bf16.msra.mxu0 %v118
  %169 = vmatprep.subr.bf16.mxu0 %v121
  %170 = vmatpush1.bf16.msra.mxu0 %v120
  %171 = vmatprep.subr.bf16.mxu0 %v123
  %172 = vmatpush1.bf16.msra.mxu0 %v122
  %173 = vmatprep.subr.bf16.mxu0 %v125
  %174 = vmatpush1.bf16.msra.mxu0 %v124
  %175 = vmatprep.subr.bf16.mxu0 %v127
  %176 = vmatpush1.bf16.msra.mxu0 %v126
  %177 = vmatprep.subr.bf16.mxu0 %v129
  %178 = vmatpush1.bf16.msra.mxu0 %v128
  %179 = vmatprep.subr.bf16.mxu0 %v131
  %180 = vmatpush1.bf16.msra.mxu0 %v130
  %181 = vmatprep.subr.bf16.mxu0 %v161
  %182 = vmatpush1.bf16.msra.mxu0 %v158
  %183 = vmatprep.subr.bf16.mxu0 0
  %184 = vmatpush1.bf16.msra.mxu0 0
  %185 = vmatprep.subr.bf16.mxu0 0
  %186 = vmatpush1.bf16.msra.mxu0 0
  %187 = vmatprep.subr.bf16.mxu0 0
  %188 = vmatpush1.bf16.msra.mxu0 0
  %189 = vmatprep.subr.bf16.mxu0 0
  %190 = vmatpush1.bf16.msra.mxu0 0
  %191 = vmatprep.subr.bf16.mxu0 0
  %192 = vmatpush1.bf16.msra.mxu0 0
  %193 = vmatprep.subr.bf16.mxu0 0
  %194 = vmatpush1.bf16.msra.mxu0 0
  %195 = vmatprep.mubr.bf16.mxu0 %v154
  %196 = vmatmul.mubr.bf16.gmra.mrb[0].mxu0 %v54
  %v197 = vpop.f32.mrb[0].mxu0
  %v198 = vadd.f32 %v41, %v197
  %v199 = vpop.f32.mrb[0].mxu0
  %v200 = vadd.f32 %v41, %v199
  %v201 = vpop.f32.mrb[0].mxu0
  %v202 = vadd.f32 %v46, %v201
  %v203 = vpop.f32.mrb[0].mxu0
  %v204 = vadd.f32 %v46, %v203
  %205 = vdwg.mxu0
  %v206 = vmax.f32 %v198, 0.0
  %v207 = vmax.f32 %v200, 0.0
  %v208 = vmax.f32 %v202, 0.0
  %v209 = vmax.f32 %v204, 0.0
  %210 = vst [vmem:[%s3] sm:$0xff] %v206
  %vm211 = vcmask 588800
  %212 = vst.msk [vmem:[%s3 + $0x8] sm:$0xff] %vm211, %v207
  %213 = vst [vmem:[%s3 + $0x10] sm:$0xff] %v208
  %214 = vst.msk [vmem:[%s3 + $0x18] sm:$0xff] %vm211, %v209
  // Predicated region
  $region14: #{net_forward.7} parent=0 // pred_check
    _
  $region15: #{net_forward.7} parent=0 // pred_check_branch
    %216 = sbr.rel (0) target = $region17
  $region16: #{net_forward.7} parent=0 // pred_region
    _
  $region17: #{net_forward.7} parent=0 // pred_fallthru
    _
  // Predicated region
  $region18: #{net_forward.7} parent=0 // pred_check
    _
  $region19: #{net_forward.7} parent=0 // pred_check_branch
    %218 = sbr.rel (0) target = $region21
  $region20: #{net_forward.7} parent=0 // pred_region
    _
  $region21: #{net_forward.7} parent=0 // pred_fallthru
    _

// kernel: net_forward.8
$region0: #{net_forward.8}
  #allocation0 [shape = 'u32[]', space=smem, size = 0x4, offset = 0x4, fixed_abs, tag = 'smem constant byte address 0x4 - core index']
  #allocation1 [shape = 'u32[144,128]{1,0:T(1,128)}', space=vmem, size = 0x12000, scoped, tag = 'internal scratch']
  %s0 = inlined_call_operand.vmem [shape: f32[16,50], index: 0, kind: input, shape index: {}]
  %s1 = inlined_call_operand.vmem [shape: f32[16,50], index: 1, kind: input, shape index: {}]
  %s2 = inlined_call_operand.vmem [shape: f32[16,50], index: 2, kind: input, shape index: {}]
  %s3 = inlined_call_operand.vmem [shape: f32[16,50], index: 3, kind: input, shape index: {}]
  %s4 = inlined_call_operand.vmem [shape: f32[16,50], index: 4, kind: output, shape index: {}]
  %s5 = sld [smem:[#allocation0]]
  $region26: #{net_forward.8} parent=0
    _
  %s7 = ssub.s32 1, %s5
  %s8 = scalar_select 0, %s7, %s5
  // Predicated region
  $region2: #{net_forward.8} parent=0 // pred_check
    _
  $region3: #{net_forward.8} parent=0 // pred_check_branch
    %10 = sbr.rel (0) target = $region5
  $region4: #{net_forward.8} parent=0 // pred_region
    _
  $region5: #{net_forward.8} parent=0 // pred_fallthru
    _
  // Predicated region
  $region6: #{net_forward.8} parent=0 // pred_check
    _
  $region7: #{net_forward.8} parent=0 // pred_check_branch
    %12 = sbr.rel (0) target = $region9
  $region8: #{net_forward.8} parent=0 // pred_region
    _
  $region9: #{net_forward.8} parent=0 // pred_fallthru
    _
  // Predicated region
  $region10: #{net_forward.8} parent=0 // pred_check
    _
  $region11: #{net_forward.8} parent=0 // pred_check_branch
    %14 = sbr.rel (0) target = $region13
  $region12: #{net_forward.8} parent=0 // pred_region
    _
  $region13: #{net_forward.8} parent=0 // pred_fallthru
    _
  // Predicated region
  $region14: #{net_forward.8} parent=0 // pred_check
    _
  $region15: #{net_forward.8} parent=0 // pred_check_branch
    %16 = sbr.rel (0) target = $region17
  $region16: #{net_forward.8} parent=0 // pred_region
    _
  $region17: #{net_forward.8} parent=0 // pred_fallthru
    _
  %v17 = vld [vmem:[%s0] sm:$0xff]
  %v18 = vld [vmem:[%s0 + $0x8] sm:$0xff]
  %v19 = vld [vmem:[%s1] sm:$0xff]
  %v20 = vld [vmem:[%s1 + $0x8] sm:$0xff]
  %v21 = vmax.f32 %v17, %v19
  %v22 = vmax.f32 %v18, %v20
  %v23 = vld [vmem:[%s2] sm:$0xff]
  %v24 = vld [vmem:[%s2 + $0x8] sm:$0xff]
  %v25 = vld [vmem:[%s3] sm:$0xff]
  %v26 = vld [vmem:[%s3 + $0x8] sm:$0xff]
  %v27 = vmax.f32 %v23, %v25
  %v28 = vmax.f32 %v24, %v26
  %v29 = vmax.f32 %v21, %v27
  %v30 = vmax.f32 %v22, %v28
  %vm31 = vcmask 408576
  %32 = vst.msk [vmem:[%s4] sm:$0xff] %vm31, %v29
  %33 = vst.msk [vmem:[%s4 + $0x8] sm:$0xff] %vm31, %v30
  // Predicated region
  $region18: #{net_forward.8} parent=0 // pred_check
    _
  $region19: #{net_forward.8} parent=0 // pred_check_branch
    %35 = sbr.rel (0) target = $region21
  $region20: #{net_forward.8} parent=0 // pred_region
    _
  $region21: #{net_forward.8} parent=0 // pred_fallthru
    _
  // Predicated region
  $region22: #{net_forward.8} parent=0 // pred_check
    _
  $region23: #{net_forward.8} parent=0 // pred_check_branch
    %37 = sbr.rel (0) target = $region25
  $region24: #{net_forward.8} parent=0 // pred_region
    _
  $region25: #{net_forward.8} parent=0 // pred_fallthru
    _

// kernel: net_forward.9
$region0: #{net_forward.9}
  #allocation0 [shape = 'u32[]', space=smem, size = 0x4, offset = 0x4, fixed_abs, tag = 'smem constant byte address 0x4 - core index']
  #allocation1 [shape = 'u32[144,128]{1,0:T(1,128)}', space=vmem, size = 0x12000, scoped, tag = 'internal scratch']
  %s0 = inlined_call_operand.vmem [shape: bf16[2,400], index: 0, kind: input, shape index: {}]
  %s1 = inlined_call_operand.vmem [shape: bf16[400,128], index: 1, kind: input, shape index: {}]
  %s2 = inlined_call_operand.vmem [shape: f32[1,128], index: 2, kind: input, shape index: {}]
  %s3 = inlined_call_operand.vmem [shape: bf16[128,128], index: 3, kind: input, shape index: {}]
  %s4 = inlined_call_operand.vmem [shape: f32[1,128], index: 4, kind: input, shape index: {}]
  %s5 = inlined_call_operand.vmem [shape: bf16[128,128], index: 5, kind: input, shape index: {}]
  %s6 = inlined_call_operand.vmem [shape: f32[1,128], index: 6, kind: input, shape index: {}]
  %s7 = inlined_call_operand.hbm [shape: f32[2,128], index: 7, kind: output, shape index: {}]
  %s8 = sld [smem:[#allocation0]]
  $region38: #{net_forward.9} parent=0
    _
  %s10 = ssub.s32 1, %s8
  %s11 = scalar_select 0, %s10, %s8
  $region1: #{net_forward.9} parent=0
    #allocation2 [shape = 'u8[1024]{0}', space=vmem, size = 0x400, scoped, tag = 'output window, operand 0, single buffered']
    #allocation3 [shape = 's32[1]{0}', space=sflag, size = 0x4, scoped, tag = 'scoped memory for net_forward.9']
    %12 = vsyncpa [#allocation3], 0
    // Predicated region
    $region2: #{net_forward.9} parent=1 // pred_check
      _
    $region3: #{net_forward.9} parent=1 // pred_check_branch
      %14 = sbr.rel (0) target = $region5
    $region4: #{net_forward.9} parent=1 // pred_region
      _
    $region5: #{net_forward.9} parent=1 // pred_fallthru
      _
    // Predicated region
    $region6: #{net_forward.9} parent=1 // pred_check
      _
    $region7: #{net_forward.9} parent=1 // pred_check_branch
      %16 = sbr.rel (0) target = $region9
    $region8: #{net_forward.9} parent=1 // pred_region
      _
    $region9: #{net_forward.9} parent=1 // pred_fallthru
      _
    // Predicated region
    $region10: #{net_forward.9} parent=1 // pred_check
      _
    $region11: #{net_forward.9} parent=1 // pred_check_branch
      %18 = sbr.rel (0) target = $region13
    $region12: #{net_forward.9} parent=1 // pred_region
      _
    $region13: #{net_forward.9} parent=1 // pred_fallthru
      _
    // Predicated region
    $region14: #{net_forward.9} parent=1 // pred_check
      _
    $region15: #{net_forward.9} parent=1 // pred_check_branch
      %20 = sbr.rel (0) target = $region17
    $region16: #{net_forward.9} parent=1 // pred_region
      _
    $region17: #{net_forward.9} parent=1 // pred_fallthru
      _
    // Predicated region
    $region18: #{net_forward.9} parent=1 // pred_check
      _
    $region19: #{net_forward.9} parent=1 // pred_check_branch
      %22 = sbr.rel (0) target = $region21
    $region20: #{net_forward.9} parent=1 // pred_region
      _
    $region21: #{net_forward.9} parent=1 // pred_fallthru
      _
    // Predicated region
    $region22: #{net_forward.9} parent=1 // pred_check
      _
    $region23: #{net_forward.9} parent=1 // pred_check_branch
      %24 = sbr.rel (0) target = $region25
    $region24: #{net_forward.9} parent=1 // pred_region
      _
    $region25: #{net_forward.9} parent=1 // pred_fallthru
      _
    // Predicated region
    $region26: #{net_forward.9} parent=1 // pred_check
      _
    $region27: #{net_forward.9} parent=1 // pred_check_branch
      %26 = sbr.rel (0) target = $region29
    $region28: #{net_forward.9} parent=1 // pred_region
      _
    $region29: #{net_forward.9} parent=1 // pred_fallthru
      _
    %v28 = vld [vmem:[%s0] sm:$0xf]
    %v29 = vld [vmem:[%s1] sm:$0xf]
    %v30 = vld [vmem:[%s1 + $0x4] sm:$0xf]
    %v31 = vld [vmem:[%s1 + $0x8] sm:$0xf]
    %v32 = vld [vmem:[%s1 + $0xc] sm:$0xf]
    %v33 = vld [vmem:[%s1 + $0x10] sm:$0xf]
    %v34 = vld [vmem:[%s1 + $0x14] sm:$0xf]
    %v35 = vld [vmem:[%s1 + $0x18] sm:$0xf]
    %v36 = vld [vmem:[%s1 + $0x1c] sm:$0xf]
    %v37 = vld [vmem:[%s1 + $0x20] sm:$0xf]
    %v38 = vld [vmem:[%s1 + $0x24] sm:$0xf]
    %v39 = vld [vmem:[%s1 + $0x28] sm:$0xf]
    %v40 = vld [vmem:[%s1 + $0x2c] sm:$0xf]
    %v41 = vld [vmem:[%s1 + $0x30] sm:$0xf]
    %v42 = vld [vmem:[%s1 + $0x34] sm:$0xf]
    %v43 = vld [vmem:[%s1 + $0x38] sm:$0xf]
    %v44 = vld [vmem:[%s1 + $0x3c] sm:$0xf]
    %v45 = vld [vmem:[%s1 + $0x40] sm:$0xf]
    %v46 = vld [vmem:[%s1 + $0x44] sm:$0xf]
    %v47 = vld [vmem:[%s1 + $0x48] sm:$0xf]
    %v48 = vld [vmem:[%s1 + $0x4c] sm:$0xf]
    %v49 = vld [vmem:[%s1 + $0x50] sm:$0xf]
    %v50 = vld [vmem:[%s1 + $0x54] sm:$0xf]
    %v51 = vld [vmem:[%s1 + $0x58] sm:$0xf]
    %v52 = vld [vmem:[%s1 + $0x5c] sm:$0xf]
    %v53 = vld [vmem:[%s1 + $0x60] sm:$0xf]
    %v54 = vld [vmem:[%s1 + $0x64] sm:$0xf]
    %v55 = vld [vmem:[%s1 + $0x68] sm:$0xf]
    %v56 = vld [vmem:[%s1 + $0x6c] sm:$0xf]
    %v57 = vld [vmem:[%s1 + $0x70] sm:$0xf]
    %v58 = vld [vmem:[%s1 + $0x74] sm:$0xf]
    %v59 = vld [vmem:[%s1 + $0x78] sm:$0xf]
    %v60 = vld [vmem:[%s1 + $0x7c] sm:$0xf]
    %v61 = vld [vmem:[%s1 + $0x80] sm:$0xf]
    %v62 = vld [vmem:[%s1 + $0x84] sm:$0xf]
    %v63 = vld [vmem:[%s1 + $0x88] sm:$0xf]
    %v64 = vld [vmem:[%s1 + $0x8c] sm:$0xf]
    %v65 = vld [vmem:[%s1 + $0x90] sm:$0xf]
    %v66 = vld [vmem:[%s1 + $0x94] sm:$0xf]
    %v67 = vld [vmem:[%s1 + $0x98] sm:$0xf]
    %v68 = vld [vmem:[%s1 + $0x9c] sm:$0xf]
    %v69 = vld [vmem:[%s1 + $0xa0] sm:$0xf]
    %v70 = vld [vmem:[%s1 + $0xa4] sm:$0xf]
    %v71 = vld [vmem:[%s1 + $0xa8] sm:$0xf]
    %v72 = vld [vmem:[%s1 + $0xac] sm:$0xf]
    %v73 = vld [vmem:[%s1 + $0xb0] sm:$0xf]
    %v74 = vld [vmem:[%s1 + $0xb4] sm:$0xf]
    %v75 = vld [vmem:[%s1 + $0xb8] sm:$0xf]
    %v76 = vld [vmem:[%s1 + $0xbc] sm:$0xf]
    %v77 = vld [vmem:[%s1 + $0xc0] sm:$0xf]
    %v78 = vld [vmem:[%s1 + $0xc4] sm:$0xf]
    %v79 = vld [vmem:[%s2] sm:$0x1]
    %v81 = vlaneseq
    %v82 = vshrl.u32 %v81, 7
    %v83 = vsub.s32 0, %v82
    %v84 = vrot.slane %v79, %v83
    %v88 = vunpack.c.l.s4 1966171168
    %v89 = vunpack.c.0.s8 %v88
    %v90 = vlaneseq
    %v91 = vshrl.u32 %v90, 7
    %v92 = vsub.s32 %v89, %v91
    %v93 = vrot.slane %v28, %v92
    %v94 = vcombine.high %v93, %v93
    %v96 = vunpack.c.l.s4 1966171168
    %v97 = vunpack.c.0.s8 %v96
    %v98 = vlaneseq
    %v99 = vshrl.u32 %v98, 7
    %v100 = vsub.s32 %v97, %v99
    %v101 = vrot.slane %v93, %v100
    %v103 = vunpack.c.l.s4 1966171168
    %v104 = vunpack.c.0.s8 %v103
    %v105 = vlaneseq
    %v106 = vshrl.u32 %v105, 7
    %v107 = vsub.s32 %v104, %v106
    %v108 = vrot.slane %v94, %v107
    %v109 = vcombine.high %v101, %v101
    %v110 = vcombine.high %v108, %v108
    %v164 = vunpack.c.l.b16 %v29
    %v165 = vunpack.c.l.b16 %v30
    %v166 = vunpack.c.l.b16 %v31
    %v167 = vunpack.c.l.b16 %v32
    %v168 = vunpack.c.l.b16 %v33
    %v169 = vunpack.c.l.b16 %v34
    %v170 = vunpack.c.l.b16 %v35
    %v171 = vunpack.c.l.b16 %v36
    %v172 = vunpack.c.l.b16 %v37
    %v173 = vunpack.c.l.b16 %v38
    %v174 = vunpack.c.l.b16 %v39
    %v175 = vunpack.c.l.b16 %v40
    %v176 = vunpack.c.l.b16 %v41
    %v177 = vunpack.c.l.b16 %v42
    %v178 = vunpack.c.l.b16 %v43
    %v179 = vunpack.c.l.b16 %v44
    %v180 = vunpack.c.l.b16 %v45
    %v181 = vunpack.c.l.b16 %v46
    %v182 = vunpack.c.l.b16 %v47
    %v183 = vunpack.c.l.b16 %v48
    %v184 = vunpack.c.l.b16 %v49
    %v185 = vunpack.c.l.b16 %v50
    %v186 = vunpack.c.l.b16 %v51
    %v187 = vunpack.c.l.b16 %v52
    %v188 = vunpack.c.l.b16 %v53
    %v189 = vunpack.c.l.b16 %v54
    %v190 = vunpack.c.l.b16 %v55
    %v191 = vunpack.c.l.b16 %v56
    %v192 = vunpack.c.l.b16 %v57
    %v193 = vunpack.c.l.b16 %v58
    %v194 = vunpack.c.l.b16 %v59
    %v195 = vunpack.c.l.b16 %v60
    %v196 = vunpack.c.l.b16 %v61
    %v197 = vunpack.c.l.b16 %v62
    %v198 = vunpack.c.l.b16 %v63
    %v199 = vunpack.c.l.b16 %v64
    %v200 = vunpack.c.l.b16 %v65
    %v201 = vunpack.c.l.b16 %v66
    %v202 = vunpack.c.l.b16 %v67
    %v203 = vunpack.c.l.b16 %v68
    %v204 = vunpack.c.l.b16 %v69
    %v205 = vunpack.c.l.b16 %v70
    %v206 = vunpack.c.l.b16 %v71
    %v207 = vunpack.c.l.b16 %v72
    %v208 = vunpack.c.l.b16 %v73
    %v209 = vunpack.c.l.b16 %v74
    %v210 = vunpack.c.l.b16 %v75
    %v211 = vunpack.c.l.b16 %v76
    %v212 = vunpack.c.l.b16 %v77
    %v213 = vunpack.c.l.b16 %v78
    %v214 = vpack.c.b16 %v165, %v164
    %v215 = vpack.c.b16 %v167, %v166
    %v216 = vpack.c.b16 %v169, %v168
    %v217 = vpack.c.b16 %v171, %v170
    %v218 = vpack.c.b16 %v173, %v172
    %v219 = vpack.c.b16 %v175, %v174
    %v220 = vpack.c.b16 %v177, %v176
    %v221 = vpack.c.b16 %v179, %v178
    %v222 = vpack.c.b16 %v181, %v180
    %v223 = vpack.c.b16 %v183, %v182
    %v224 = vpack.c.b16 %v185, %v184
    %v225 = vpack.c.b16 %v187, %v186
    %v226 = vpack.c.b16 %v189, %v188
    %v227 = vpack.c.b16 %v191, %v190
    %v228 = vpack.c.b16 %v193, %v192
    %v229 = vpack.c.b16 %v195, %v194
    %v230 = vpack.c.b16 %v197, %v196
    %v231 = vpack.c.b16 %v199, %v198
    %v232 = vpack.c.b16 %v201, %v200
    %v233 = vpack.c.b16 %v203, %v202
    %v234 = vpack.c.b16 %v205, %v204
    %v235 = vpack.c.b16 %v207, %v206
    %v236 = vpack.c.b16 %v209, %v208
    %v237 = vpack.c.b16 %v211, %v210
    %v238 = vpack.c.b16 %v213, %v212
    %vm264 = vcmask 130048
    %v266 = vsel %vm264, %v110, 0
    %268 = vmatprep.subr.bf16.mxu0 0
    %269 = vmatpush1.bf16.msra.mxu0 %v214
    %270 = vmatprep.subr.bf16.mxu0 0
    %271 = vmatpush1.bf16.msra.mxu0 %v215
    %272 = vmatprep.subr.bf16.mxu0 0
    %273 = vmatpush1.bf16.msra.mxu0 %v216
    %274 = vmatprep.subr.bf16.mxu0 0
    %275 = vmatpush1.bf16.msra.mxu0 %v217
    %276 = vmatprep.subr.bf16.mxu0 0
    %277 = vmatpush1.bf16.msra.mxu0 %v218
    %278 = vmatprep.subr.bf16.mxu0 0
    %279 = vmatpush1.bf16.msra.mxu0 %v219
    %280 = vmatprep.subr.bf16.mxu0 0
    %281 = vmatpush1.bf16.msra.mxu0 %v220
    %282 = vmatprep.subr.bf16.mxu0 0
    %283 = vmatpush1.bf16.msra.mxu0 %v221
    %284 = vmatprep.subr.bf16.mxu0 0
    %285 = vmatpush1.bf16.msra.mxu0 %v222
    %286 = vmatprep.subr.bf16.mxu0 0
    %287 = vmatpush1.bf16.msra.mxu0 %v223
    %288 = vmatprep.subr.bf16.mxu0 0
    %289 = vmatpush1.bf16.msra.mxu0 %v224
    %290 = vmatprep.subr.bf16.mxu0 0
    %291 = vmatpush1.bf16.msra.mxu0 %v225
    %292 = vmatprep.subr.bf16.mxu0 0
    %293 = vmatpush1.bf16.msra.mxu0 %v226
    %294 = vmatprep.subr.bf16.mxu0 0
    %295 = vmatpush1.bf16.msra.mxu0 %v227
    %296 = vmatprep.subr.bf16.mxu0 0
    %297 = vmatpush1.bf16.msra.mxu0 %v228
    %298 = vmatprep.subr.bf16.mxu0 0
    %299 = vmatpush1.bf16.msra.mxu0 %v229
    %300 = vmatprep.mubr.bf16.mxu0 %v108
    %301 = vmatmul.mubr.bf16.gmra.mrb[0].mxu0 %v101
    %v302 = vpop.f32.mrb[0].mxu0
    %v303 = vadd.f32 %v84, %v302
    %v304 = vpop.f32.mrb[0].mxu0
    %v305 = vpop.f32.mrb[0].mxu0
    %v306 = vpop.f32.mrb[0].mxu0
    %307 = vdwg.mxu0
    %308 = vmatprep.subr.bf16.mxu0 0
    %309 = vmatpush1.bf16.msra.mxu0 %v230
    %310 = vmatprep.subr.bf16.mxu0 0
    %311 = vmatpush1.bf16.msra.mxu0 %v231
    %312 = vmatprep.subr.bf16.mxu0 0
    %313 = vmatpush1.bf16.msra.mxu0 %v232
    %314 = vmatprep.subr.bf16.mxu0 0
    %315 = vmatpush1.bf16.msra.mxu0 %v233
    %316 = vmatprep.subr.bf16.mxu0 0
    %317 = vmatpush1.bf16.msra.mxu0 %v234
    %318 = vmatprep.subr.bf16.mxu0 0
    %319 = vmatpush1.bf16.msra.mxu0 %v235
    %320 = vmatprep.subr.bf16.mxu0 0
    %321 = vmatpush1.bf16.msra.mxu0 %v236
    %322 = vmatprep.subr.bf16.mxu0 0
    %323 = vmatpush1.bf16.msra.mxu0 %v237
    %324 = vmatprep.subr.bf16.mxu0 0
    %325 = vmatpush1.bf16.msra.mxu0 %v238
    %326 = vmatprep.subr.bf16.mxu0 0
    %327 = vmatpush1.bf16.msra.mxu0 0
    %328 = vmatprep.subr.bf16.mxu0 0
    %329 = vmatpush1.bf16.msra.mxu0 0
    %330 = vmatprep.subr.bf16.mxu0 0
    %331 = vmatpush1.bf16.msra.mxu0 0
    %332 = vmatprep.subr.bf16.mxu0 0
    %333 = vmatpush1.bf16.msra.mxu0 0
    %334 = vmatprep.subr.bf16.mxu0 0
    %335 = vmatpush1.bf16.msra.mxu0 0
    %336 = vmatprep.subr.bf16.mxu0 0
    %337 = vmatpush1.bf16.msra.mxu0 0
    %338 = vmatprep.subr.bf16.mxu0 0
    %339 = vmatpush1.bf16.msra.mxu0 0
    %340 = vmatprep.mubr.bf16.mxu0 %v266
    %341 = vmatmul.mubr.bf16.gmra.mrb[0].mxu0 %v109
    %v342 = vpop.f32.mrb[0].mxu0
    %v343 = vadd.f32 %v303, %v342
    %v344 = vpop.f32.mrb[0].mxu0
    %v345 = vpop.f32.mrb[0].mxu0
    %v346 = vpop.f32.mrb[0].mxu0
    %347 = vdwg.mxu0
    %v348 = vmax.f32 %v343, 0.0
    %v349 = vpack.c.bf16 %v348, %v348
    %v350 = vld [vmem:[%s3] sm:$0xf]
    %v351 = vld [vmem:[%s3 + $0x4] sm:$0xf]
    %v352 = vld [vmem:[%s3 + $0x8] sm:$0xf]
    %v353 = vld [vmem:[%s3 + $0xc] sm:$0xf]
    %v354 = vld [vmem:[%s3 + $0x10] sm:$0xf]
    %v355 = vld [vmem:[%s3 + $0x14] sm:$0xf]
    %v356 = vld [vmem:[%s3 + $0x18] sm:$0xf]
    %v357 = vld [vmem:[%s3 + $0x1c] sm:$0xf]
    %v358 = vld [vmem:[%s3 + $0x20] sm:$0xf]
    %v359 = vld [vmem:[%s3 + $0x24] sm:$0xf]
    %v360 = vld [vmem:[%s3 + $0x28] sm:$0xf]
    %v361 = vld [vmem:[%s3 + $0x2c] sm:$0xf]
    %v362 = vld [vmem:[%s3 + $0x30] sm:$0xf]
    %v363 = vld [vmem:[%s3 + $0x34] sm:$0xf]
    %v364 = vld [vmem:[%s3 + $0x38] sm:$0xf]
    %v365 = vld [vmem:[%s3 + $0x3c] sm:$0xf]
    %v366 = vld [vmem:[%s4] sm:$0x1]
    %v368 = vlaneseq
    %v369 = vshrl.u32 %v368, 7
    %v370 = vsub.s32 0, %v369
    %v371 = vrot.slane %v366, %v370
    %v389 = vunpack.c.l.b16 %v350
    %v390 = vunpack.c.l.b16 %v351
    %v391 = vunpack.c.l.b16 %v352
    %v392 = vunpack.c.l.b16 %v353
    %v393 = vunpack.c.l.b16 %v354
    %v394 = vunpack.c.l.b16 %v355
    %v395 = vunpack.c.l.b16 %v356
    %v396 = vunpack.c.l.b16 %v357
    %v397 = vunpack.c.l.b16 %v358
    %v398 = vunpack.c.l.b16 %v359
    %v399 = vunpack.c.l.b16 %v360
    %v400 = vunpack.c.l.b16 %v361
    %v401 = vunpack.c.l.b16 %v362
    %v402 = vunpack.c.l.b16 %v363
    %v403 = vunpack.c.l.b16 %v364
    %v404 = vunpack.c.l.b16 %v365
    %v405 = vpack.c.b16 %v390, %v389
    %v406 = vpack.c.b16 %v392, %v391
    %v407 = vpack.c.b16 %v394, %v393
    %v408 = vpack.c.b16 %v396, %v395
    %v409 = vpack.c.b16 %v398, %v397
    %v410 = vpack.c.b16 %v400, %v399
    %v411 = vpack.c.b16 %v402, %v401
    %v412 = vpack.c.b16 %v404, %v403
    %421 = vmatprep.subr.bf16.mxu0 0
    %422 = vmatpush1.bf16.msra.mxu0 %v405
    %423 = vmatprep.subr.bf16.mxu0 0
    %424 = vmatpush1.bf16.msra.mxu0 %v406
    %425 = vmatprep.subr.bf16.mxu0 0
    %426 = vmatpush1.bf16.msra.mxu0 %v407
    %427 = vmatprep.subr.bf16.mxu0 0
    %428 = vmatpush1.bf16.msra.mxu0 %v408
    %429 = vmatprep.subr.bf16.mxu0 0
    %430 = vmatpush1.bf16.msra.mxu0 %v409
    %431 = vmatprep.subr.bf16.mxu0 0
    %432 = vmatpush1.bf16.msra.mxu0 %v410
    %433 = vmatprep.subr.bf16.mxu0 0
    %434 = vmatpush1.bf16.msra.mxu0 %v411
    %435 = vmatprep.subr.bf16.mxu0 0
    %436 = vmatpush1.bf16.msra.mxu0 %v412
    %437 = vmatprep.subr.bf16.mxu0 0
    %438 = vmatpush1.bf16.msra.mxu0 0
    %439 = vmatprep.subr.bf16.mxu0 0
    %440 = vmatpush1.bf16.msra.mxu0 0
    %441 = vmatprep.subr.bf16.mxu0 0
    %442 = vmatpush1.bf16.msra.mxu0 0
    %443 = vmatprep.subr.bf16.mxu0 0
    %444 = vmatpush1.bf16.msra.mxu0 0
    %445 = vmatprep.subr.bf16.mxu0 0
    %446 = vmatpush1.bf16.msra.mxu0 0
    %447 = vmatprep.subr.bf16.mxu0 0
    %448 = vmatpush1.bf16.msra.mxu0 0
    %449 = vmatprep.subr.bf16.mxu0 0
    %450 = vmatpush1.bf16.msra.mxu0 0
    %451 = vmatprep.subr.bf16.mxu0 0
    %452 = vmatpush1.bf16.msra.mxu0 0
    %453 = vmatprep.mubr.bf16.mxu0 0
    %454 = vmatmul.mubr.bf16.gmra.mrb[0].mxu0 %v349
    %v455 = vpop.f32.mrb[0].mxu0
    %v456 = vadd.f32 %v371, %v455
    %v457 = vpop.f32.mrb[0].mxu0
    %v458 = vpop.f32.mrb[0].mxu0
    %v459 = vpop.f32.mrb[0].mxu0
    %460 = vdwg.mxu0
    %v461 = vmax.f32 %v456, 0.0
    %v462 = vpack.c.bf16 %v461, %v461
    %v463 = vld [vmem:[%s5] sm:$0xf]
    %v464 = vld [vmem:[%s5 + $0x4] sm:$0xf]
    %v465 = vld [vmem:[%s5 + $0x8] sm:$0xf]
    %v466 = vld [vmem:[%s5 + $0xc] sm:$0xf]
    %v467 = vld [vmem:[%s5 + $0x10] sm:$0xf]
    %v468 = vld [vmem:[%s5 + $0x14] sm:$0xf]
    %v469 = vld [vmem:[%s5 + $0x18] sm:$0xf]
    %v470 = vld [vmem:[%s5 + $0x1c] sm:$0xf]
    %v471 = vld [vmem:[%s5 + $0x20] sm:$0xf]
    %v472 = vld [vmem:[%s5 + $0x24] sm:$0xf]
    %v473 = vld [vmem:[%s5 + $0x28] sm:$0xf]
    %v474 = vld [vmem:[%s5 + $0x2c] sm:$0xf]
    %v475 = vld [vmem:[%s5 + $0x30] sm:$0xf]
    %v476 = vld [vmem:[%s5 + $0x34] sm:$0xf]
    %v477 = vld [vmem:[%s5 + $0x38] sm:$0xf]
    %v478 = vld [vmem:[%s5 + $0x3c] sm:$0xf]
    %v479 = vld [vmem:[%s6] sm:$0x1]
    %v481 = vlaneseq
    %v482 = vshrl.u32 %v481, 7
    %v483 = vsub.s32 0, %v482
    %v484 = vrot.slane %v479, %v483
    %v502 = vunpack.c.l.b16 %v463
    %v503 = vunpack.c.l.b16 %v464
    %v504 = vunpack.c.l.b16 %v465
    %v505 = vunpack.c.l.b16 %v466
    %v506 = vunpack.c.l.b16 %v467
    %v507 = vunpack.c.l.b16 %v468
    %v508 = vunpack.c.l.b16 %v469
    %v509 = vunpack.c.l.b16 %v470
    %v510 = vunpack.c.l.b16 %v471
    %v511 = vunpack.c.l.b16 %v472
    %v512 = vunpack.c.l.b16 %v473
    %v513 = vunpack.c.l.b16 %v474
    %v514 = vunpack.c.l.b16 %v475
    %v515 = vunpack.c.l.b16 %v476
    %v516 = vunpack.c.l.b16 %v477
    %v517 = vunpack.c.l.b16 %v478
    %v518 = vpack.c.b16 %v503, %v502
    %v519 = vpack.c.b16 %v505, %v504
    %v520 = vpack.c.b16 %v507, %v506
    %v521 = vpack.c.b16 %v509, %v508
    %v522 = vpack.c.b16 %v511, %v510
    %v523 = vpack.c.b16 %v513, %v512
    %v524 = vpack.c.b16 %v515, %v514
    %v525 = vpack.c.b16 %v517, %v516
    %534 = vmatprep.subr.bf16.mxu0 0
    %535 = vmatpush1.bf16.msra.mxu0 %v518
    %536 = vmatprep.subr.bf16.mxu0 0
    %537 = vmatpush1.bf16.msra.mxu0 %v519
    %538 = vmatprep.subr.bf16.mxu0 0
    %539 = vmatpush1.bf16.msra.mxu0 %v520
    %540 = vmatprep.subr.bf16.mxu0 0
    %541 = vmatpush1.bf16.msra.mxu0 %v521
    %542 = vmatprep.subr.bf16.mxu0 0
    %543 = vmatpush1.bf16.msra.mxu0 %v522
    %544 = vmatprep.subr.bf16.mxu0 0
    %545 = vmatpush1.bf16.msra.mxu0 %v523
    %546 = vmatprep.subr.bf16.mxu0 0
    %547 = vmatpush1.bf16.msra.mxu0 %v524
    %548 = vmatprep.subr.bf16.mxu0 0
    %549 = vmatpush1.bf16.msra.mxu0 %v525
    %550 = vmatprep.subr.bf16.mxu0 0
    %551 = vmatpush1.bf16.msra.mxu0 0
    %552 = vmatprep.subr.bf16.mxu0 0
    %553 = vmatpush1.bf16.msra.mxu0 0
    %554 = vmatprep.subr.bf16.mxu0 0
    %555 = vmatpush1.bf16.msra.mxu0 0
    %556 = vmatprep.subr.bf16.mxu0 0
    %557 = vmatpush1.bf16.msra.mxu0 0
    %558 = vmatprep.subr.bf16.mxu0 0
    %559 = vmatpush1.bf16.msra.mxu0 0
    %560 = vmatprep.subr.bf16.mxu0 0
    %561 = vmatpush1.bf16.msra.mxu0 0
    %562 = vmatprep.subr.bf16.mxu0 0
    %563 = vmatpush1.bf16.msra.mxu0 0
    %564 = vmatprep.subr.bf16.mxu0 0
    %565 = vmatpush1.bf16.msra.mxu0 0
    %566 = vmatprep.mubr.bf16.mxu0 0
    %567 = vmatmul.mubr.bf16.gmra.mrb[0].mxu0 %v462
    %v568 = vpop.f32.mrb[0].mxu0
    %v569 = vadd.f32 %v484, %v568
    %v570 = vpop.f32.mrb[0].mxu0
    %v571 = vpop.f32.mrb[0].mxu0
    %v572 = vpop.f32.mrb[0].mxu0
    %573 = vdwg.mxu0
    %574 = vst [vmem:[#allocation2] sm:$0x3] %v569
    // Predicated region
    $region30: #{net_forward.9} parent=1 // pred_check
      _
    $region31: #{net_forward.9} parent=1 // pred_check_branch
      %576 = sbr.rel (0) target = $region33
    $region32: #{net_forward.9} parent=1 // pred_region
      %s578 = ssub.s32 32, 32
      %579 = vsyncadd [#allocation3], %s578
      %s581 = sshll.u32 [#allocation2], 4
      %s582 = int_to_ptr.vmem [resolvable:$true] %s581
      %584 = dma.vmem_to_hbm [thread:$0]  %s582, 32, %s7, [#allocation3]
    $region33: #{net_forward.9} parent=1 // pred_fallthru
      _
    // Predicated region
    $region34: #{net_forward.9} parent=1 // pred_check
      _
    $region35: #{net_forward.9} parent=1 // pred_check_branch
      %586 = sbr.rel (0) target = $region37
    $region36: #{net_forward.9} parent=1 // pred_region
      %587 = dma.done [#allocation3], 32
    $region37: #{net_forward.9} parent=1 // pred_fallthru
      _
    %588 = vsyncpa [#allocation3], 1

</llo_original>
